<compile_context>
chip_gen: v6e
topology: v6e:2x2x1
jax: 0.10.0
libtpu: 0.0.40
codegen_flags: <defaults>
</compile_context>

<pallas_src>
import functools

import jax
import jax.numpy as jnp
from jax.experimental import pallas as pl
from jax.experimental.pallas import tpu as pltpu


_MXU_BATCH_ROWS = 256      # fill MXU rows (256 on v6e/v7x; two 128-row passes on v5e)
_MAX_UNROLL_STEPS = 32     # fully unroll the recurrence up to this many steps


def _round_up(x, m):
    return ((x + m - 1) // m) * m


def _batch_tiling(batch):
    """Pick (batch_block, padded_batch).

    Block is a multiple of 8 sublanes, capped at _MXU_BATCH_ROWS so the
    recurrent (Bp, Hp) @ (Hp, 4*Hp) matmul fills the MXU rows, and chosen so
    the grid has >= 2 programs whenever batch > 8 (lets the "parallel" grid
    axis shard across v7x's two TensorCores; v5e/v6e just loop).
    """
    b8 = _round_up(max(int(batch), 1), 8)
    if b8 <= 8:
        return 8, 8
    n_prog = max(2, -(-b8 // _MXU_BATCH_ROWS))          # ceil-div
    blk = _round_up(-(-b8 // n_prog), 8)
    return blk, n_prog * blk


def lstm_network_kernel(x_ref, wih_ref, whh_ref, b_ref, wfc_ref, bfc_ref,
                        out_ref, zx_ref, *, o_valid):
    """One batch-block of the LSTM recurrence + FC + softmax, fully in VMEM.

    x_ref   : (T, Bp, I)     time-major input block (Bp = batch block, mult. of 8)
    wih_ref : (I, 4*Hp)      W_ih^T, bf16, gate blocks (i,f,g,o) lane-padded to Hp
    whh_ref : (Hp, 4*Hp)     W_hh^T, bf16, same gate layout, zero-padded rows
    b_ref   : (1, 4*Hp)      b_ih + b_hh, f32, gate-padded
    wfc_ref : (Hp, Op)       fc.weight^T, bf16, zero-padded
    bfc_ref : (1, Op)        fc.bias, f32, zero-padded
    out_ref : (Bp, Op)       lane-dense softmax output (valid values in [:, :o_valid])
    zx_ref  : (T, Bp, 4*Hp)  f32 VMEM scratch holding the hoisted input projection
    """
    T, Bp, I = x_ref.shape
    Hp = whh_ref.shape[0]          # padded hidden size (multiple of 128)
    Op = out_ref.shape[1]          # padded output lanes (multiple of 128)

    # ---- Hoisted input projection: ONE MXU call covering all T steps. ----
    # Result is parked in the VMEM scratch (not held live in vregs across the
    # recurrence); each step later reads one contiguous (Bp, 4*Hp) slab.
    x_flat = x_ref[...].reshape(T * Bp, I).astype(jnp.bfloat16)
    zx = jnp.dot(x_flat, wih_ref[...], preferred_element_type=jnp.float32)
    zx_ref[...] = (zx + b_ref[...]).reshape(T, Bp, 4 * Hp)

    whh = whh_ref[...]             # bf16 recurrent weights, loaded once, reused every step

    def step(zx_t, h, c):
        # Recurrent projection: (Bp, Hp) @ (Hp, 4*Hp); Bp is the MXU row dim,
        # so large batch blocks fill the systolic array. f32 accumulation.
        z = zx_t + jnp.dot(h.astype(jnp.bfloat16), whh,
                           preferred_element_type=jnp.float32)
        i_g = jax.nn.sigmoid(z[:, 0 * Hp:1 * Hp])     # lane-aligned 128-wide gate blocks
        f_g = jax.nn.sigmoid(z[:, 1 * Hp:2 * Hp])
        g_g = jnp.tanh(z[:, 2 * Hp:3 * Hp])
        o_g = jax.nn.sigmoid(z[:, 3 * Hp:4 * Hp])
        c_new = f_g * c + i_g * g_g
        h_new = o_g * jnp.tanh(c_new)
        return h_new, c_new

    h = jnp.zeros((Bp, Hp), jnp.float32)
    c = jnp.zeros((Bp, Hp), jnp.float32)

    if T <= _MAX_UNROLL_STEPS:
        # Small static T: fully unrolled, every zx slice is static.
        for t in range(T):
            h, c = step(zx_ref[t], h, c)
    else:
        # Large T: bounded code size and vreg pressure; zx_ref[t] is a clean
        # leading-axis dynamic slice of the time-major scratch.
        def body(t, carry):
            return step(zx_ref[t], *carry)
        h, c = jax.lax.fori_loop(0, T, body, (h, c))

    # Dropout(p=0.1) on h_n is an identity in eval mode.
    # TODO(synk): training-mode dropout (Bernoulli mask via pltpu.prng_random_bits) not implemented.

    logits = (jnp.dot(h.astype(jnp.bfloat16), wfc_ref[...],
                      preferred_element_type=jnp.float32) + bfc_ref[...])   # (Bp, Op)

    # Softmax over dim=1; padded lanes masked so they contribute exactly 0.
    lane = jax.lax.broadcasted_iota(jnp.int32, (Bp, Op), 1)
    logits = jnp.where(lane < o_valid, logits, jnp.float32(-1e30))
    m = jnp.max(logits, axis=-1, keepdims=True)
    e = jnp.exp(logits - m)
    denom = jnp.sum(e, axis=-1, keepdims=True)
    out_ref[...] = e / denom       # exact divide (approx reciprocal not worth the error here)


def prepare_params(params, weight_dtype=jnp.bfloat16):
    """One-time conversion of PyTorch-shaped weights to the padded kernel layout.

    Call ONCE at model-load time, not per forward call. PyTorch gate order
    along dim 0 of w_ih / w_hh / biases is (i, f, g, o).
    """
    w_ih, w_hh, b_ih, b_hh, w_fc, b_fc = (jnp.asarray(p) for p in params)
    f32 = jnp.float32
    I = w_ih.shape[1]
    H = w_hh.shape[1]
    O = w_fc.shape[0]
    H_pad = _round_up(H, 128)      # each gate occupies a full 128-lane block
    O_pad = _round_up(O, 128)      # lane-dense output store

    wih_g = jnp.transpose(w_ih.astype(f32)).reshape(I, 4, H)
    wih_p = jnp.zeros((I, 4, H_pad), f32).at[:, :, :H].set(wih_g)
    wih_p = wih_p.reshape(I, 4 * H_pad).astype(weight_dtype)

    whh_g = jnp.transpose(w_hh.astype(f32)).reshape(H, 4, H)
    whh_p = jnp.zeros((H_pad, 4, H_pad), f32).at[:H, :, :H].set(whh_g)
    whh_p = whh_p.reshape(H_pad, 4 * H_pad).astype(weight_dtype)

    b_g = (b_ih + b_hh).astype(f32).reshape(4, H)
    b_p = jnp.zeros((4, H_pad), f32).at[:, :H].set(b_g).reshape(1, 4 * H_pad)

    wfc_p = jnp.zeros((H_pad, O_pad), f32).at[:H, :O].set(
        jnp.transpose(w_fc.astype(f32))).astype(weight_dtype)
    bfc_p = jnp.zeros((1, O_pad), f32).at[0, :O].set(b_fc.astype(f32))

    return dict(wih=wih_p, whh=whh_p, b=b_p, wfc=wfc_p, bfc=bfc_p,
                input_size=I, hidden_pad=H_pad, output_size=O, output_pad=O_pad)


def make_forward_fn(params):
    """Prepare weights once and return a jitted forward(x: (B,T,I)) -> (B,O)."""
    p = prepare_params(params)
    wih_p, whh_p, b_p, wfc_p, bfc_p = p["wih"], p["whh"], p["b"], p["wfc"], p["bfc"]
    I, H_pad = p["input_size"], p["hidden_pad"]
    O, O_pad = p["output_size"], p["output_pad"]

    @jax.jit
    def forward(x):
        B, T, Ix = x.shape
        assert Ix == I, f"input feature size {Ix} != model input_size {I}"
        B_blk, B_pad = _batch_tiling(B)

        # Time-major, sublane-padded input slab (single fused XLA transpose+pad).
        x_t = jnp.swapaxes(x.astype(jnp.float32), 0, 1)          # (T, B, I)
        if B_pad != B:
            x_p = jnp.zeros((T, B_pad, I), jnp.float32).at[:, :B, :].set(x_t)
        else:
            x_p = x_t

        kernel = functools.partial(lstm_network_kernel, o_valid=O)
        grid = (B_pad // B_blk,)

        out_p = pl.pallas_call(
            kernel,
            out_shape=jax.ShapeDtypeStruct((B_pad, O_pad), jnp.float32),
            grid=grid,
            in_specs=[
                pl.BlockSpec((T, B_blk, I), lambda i: (0, i, 0)),     # per-program batch block
                pl.BlockSpec((I, 4 * H_pad), lambda i: (0, 0)),       # weights broadcast
                pl.BlockSpec((H_pad, 4 * H_pad), lambda i: (0, 0)),
                pl.BlockSpec((1, 4 * H_pad), lambda i: (0, 0)),
                pl.BlockSpec((H_pad, O_pad), lambda i: (0, 0)),
                pl.BlockSpec((1, O_pad), lambda i: (0, 0)),
            ],
            out_specs=pl.BlockSpec((B_blk, O_pad), lambda i: (i, 0)),
            scratch_shapes=[pltpu.VMEM((T, B_blk, 4 * H_pad), jnp.float32)],
            compiler_params=pltpu.CompilerParams(
                dimension_semantics=("parallel",)),                   # megacore sharding on v7x
        )(x_p, wih_p, whh_p, b_p, wfc_p, bfc_p)

        return out_p[:B, :O]

    return forward


def reference_forward(x, params):
    """Pure-JAX f32 reference matching PyTorch LSTM -> fc -> softmax semantics."""
    w_ih, w_hh, b_ih, b_hh, w_fc, b_fc = params
    B, T, I = x.shape
    H = w_hh.shape[1]
    h = jnp.zeros((B, H), jnp.float32)
    c = jnp.zeros((B, H), jnp.float32)
    for t in range(T):
        z = x[:, t, :] @ w_ih.T + b_ih + h @ w_hh.T + b_hh
        i, f, g, o = jnp.split(z, 4, axis=1)
        i = jax.nn.sigmoid(i)
        f = jax.nn.sigmoid(f)
        g = jnp.tanh(g)
        o = jax.nn.sigmoid(o)
        c = f * c + i * g
        h = o * jnp.tanh(c)
    logits = h @ w_fc.T + b_fc
    return jax.nn.softmax(logits, axis=1)


def init_params(key, input_size, hidden_size, output_size):
    """Deterministic synthetic params with PyTorch-style uniform init and shapes."""
    k = 1.0 / jnp.sqrt(hidden_size)
    keys = jax.random.split(key, 6)
    w_ih = jax.random.uniform(keys[0], (4 * hidden_size, input_size), jnp.float32, -k, k)
    w_hh = jax.random.uniform(keys[1], (4 * hidden_size, hidden_size), jnp.float32, -k, k)
    b_ih = jax.random.uniform(keys[2], (4 * hidden_size,), jnp.float32, -k, k)
    b_hh = jax.random.uniform(keys[3], (4 * hidden_size,), jnp.float32, -k, k)
    w_fc = jax.random.uniform(keys[4], (output_size, hidden_size), jnp.float32, -k, k)
    b_fc = jax.random.uniform(keys[5], (output_size,), jnp.float32, -k, k)
    return (w_ih, w_hh, b_ih, b_hh, w_fc, b_fc)


if __name__ == "__main__":
    B, T, I, H, O = 4, 8, 16, 32, 8

    key = jax.random.PRNGKey(0)
    kx, kx2, kp = jax.random.split(key, 3)
    x = jax.random.normal(kx, (B, T, I), jnp.float32)
    params = init_params(kp, I, H, O)

    forward = make_forward_fn(params)          # weight prep happens exactly once, here

    out = jax.block_until_ready(forward(x))
    ref = jax.block_until_ready(reference_forward(x, params))

    assert out.shape == (B, O)
    assert jnp.allclose(jnp.sum(out, axis=1), 1.0, atol=1e-3)   # exact-divide softmax rows
    assert jnp.allclose(out, ref, atol=2e-2, rtol=2e-2), (
        f"max abs err {float(jnp.max(jnp.abs(out - ref)))}")

    # Also exercise the multi-program (grid >= 2) batch-tiling path.
    B2 = 20
    x2 = jax.random.normal(kx2, (B2, T, I), jnp.float32)
    out2 = jax.block_until_ready(forward(x2))
    ref2 = jax.block_until_ready(reference_forward(x2, params))
    assert out2.shape == (B2, O)
    assert jnp.allclose(out2, ref2, atol=2e-2, rtol=2e-2), (
        f"max abs err {float(jnp.max(jnp.abs(out2 - ref2)))}")

    print("KERNEL_OK")
</pallas_src>

<mosaic_0001>
module attributes {stable_mosaic.version = 11 : i64} {
  func.func @lstm_network_kernel(%arg0: i32, %arg1: memref<8x8x16xf32, #tpu.memory_space<vmem>>, %arg2: memref<16x512xbf16, #tpu.memory_space<vmem>>, %arg3: memref<128x512xbf16, #tpu.memory_space<vmem>>, %arg4: memref<1x512xf32, #tpu.memory_space<vmem>>, %arg5: memref<128x128xbf16, #tpu.memory_space<vmem>>, %arg6: memref<1x128xf32, #tpu.memory_space<vmem>>, %arg7: memref<8x128xf32, #tpu.memory_space<vmem>>, %arg8: memref<8x8x512xf32, #tpu.memory_space<vmem>>) attributes {dimension_semantics = [#tpu.dimension_semantics<parallel>], iteration_bounds = array<i64: 1>, scalar_prefetch = 0 : i64, scratch_operands = 1 : i64, tpu.core_type = #tpu.core_type<tc>, window_params = [{transform_indices = @transform_0, window_bounds = array<i64: 8, 8, 16>}, {pipeline_mode = #tpu.pipeline_mode<synchronous>, transform_indices = @transform_1, window_bounds = array<i64: 16, 512>}, {pipeline_mode = #tpu.pipeline_mode<synchronous>, transform_indices = @transform_2, window_bounds = array<i64: 128, 512>}, {pipeline_mode = #tpu.pipeline_mode<synchronous>, transform_indices = @transform_3, window_bounds = array<i64: 1, 512>}, {pipeline_mode = #tpu.pipeline_mode<synchronous>, transform_indices = @transform_4, window_bounds = array<i64: 128, 128>}, {pipeline_mode = #tpu.pipeline_mode<synchronous>, transform_indices = @transform_5, window_bounds = array<i64: 1, 128>}, {transform_indices = @transform_6, window_bounds = array<i64: 8, 128>}]} {
    %c0 = arith.constant 0 : index
    %c0_0 = arith.constant 0 : index
    %c0_1 = arith.constant 0 : index
    %0 = vector.load %arg1[%c0, %c0_0, %c0_1] : memref<8x8x16xf32, #tpu.memory_space<vmem>>, vector<8x8x16xf32>
    %1 = vector.shape_cast %0 : vector<8x8x16xf32> to vector<64x16xf32>
    %2 = arith.truncf %1 : vector<64x16xf32> to vector<64x16xbf16>
    %c0_2 = arith.constant 0 : index
    %c0_3 = arith.constant 0 : index
    %3 = vector.load %arg2[%c0_2, %c0_3] : memref<16x512xbf16, #tpu.memory_space<vmem>>, vector<16x512xbf16>
    %cst = arith.constant dense<0.000000e+00> : vector<64x512xf32>
    %4 = tpu.matmul %2, %3, %cst {dimension_numbers = #tpu.dot_dimension_numbers<[1], [0], [0], [1], [0, 0, 1, 1], [], []>} : vector<64x16xbf16>, vector<16x512xbf16>, vector<64x512xf32> -> vector<64x512xf32>
    %c0_4 = arith.constant 0 : index
    %c0_5 = arith.constant 0 : index
    %5 = vector.load %arg4[%c0_4, %c0_5] : memref<1x512xf32, #tpu.memory_space<vmem>>, vector<1x512xf32>
    %6 = vector.broadcast %5 : vector<1x512xf32> to vector<64x512xf32>
    %7 = arith.addf %4, %6 : vector<64x512xf32>
    %8 = vector.shape_cast %7 : vector<64x512xf32> to vector<8x8x512xf32>
    %c0_6 = arith.constant 0 : index
    %c0_7 = arith.constant 0 : index
    %c0_8 = arith.constant 0 : index
    %9 = vector.load %arg8[%c0_6, %c0_7, %c0_8] : memref<8x8x512xf32, #tpu.memory_space<vmem>>, vector<8x8x512xf32>
    tpu.vector_store %arg8[%c0_6, %c0_7, %c0_8], %8 {strides = array<i32>} : memref<8x8x512xf32, #tpu.memory_space<vmem>>, vector<8x8x512xf32>,
    %c0_9 = arith.constant 0 : index
    %c0_10 = arith.constant 0 : index
    %10 = vector.load %arg3[%c0_9, %c0_10] : memref<128x512xbf16, #tpu.memory_space<vmem>>, vector<128x512xbf16>
    %cst_11 = arith.constant 0.000000e+00 : f32
    %11 = vector.broadcast %cst_11 : f32 to vector<8x128xf32>
    %cst_12 = arith.constant 0.000000e+00 : f32
    %12 = vector.broadcast %cst_12 : f32 to vector<8x128xf32>
    %c0_13 = arith.constant 0 : index
    %c0_14 = arith.constant 0 : index
    %c0_15 = arith.constant 0 : index
    %13 = vector.load %arg8[%c0_13, %c0_14, %c0_15] : memref<8x8x512xf32, #tpu.memory_space<vmem>>, vector<1x8x512xf32>
    %14 = vector.shape_cast %13 : vector<1x8x512xf32> to vector<8x512xf32>
    %15 = arith.truncf %11 : vector<8x128xf32> to vector<8x128xbf16>
    %cst_16 = arith.constant dense<0.000000e+00> : vector<8x512xf32>
    %16 = tpu.matmul %15, %10, %cst_16 {dimension_numbers = #tpu.dot_dimension_numbers<[1], [0], [0], [1], [0, 0, 1, 1], [], []>} : vector<8x128xbf16>, vector<128x512xbf16>, vector<8x512xf32> -> vector<8x512xf32>
    %17 = arith.addf %14, %16 : vector<8x512xf32>
    %18 = vector.extract_strided_slice %17 {offsets = [0, 0], sizes = [8, 128], strides = [1, 1]} : vector<8x512xf32> to vector<8x128xf32>
    %19 = arith.negf %18 : vector<8x128xf32>
    %20 = math.exp %19 : vector<8x128xf32>
    %cst_17 = arith.constant 1.000000e+00 : f32
    %21 = vector.broadcast %cst_17 : f32 to vector<8x128xf32>
    %22 = arith.addf %21, %20 : vector<8x128xf32>
    %23 = arith.divf %21, %22 : vector<8x128xf32>
    %24 = vector.extract_strided_slice %17 {offsets = [0, 128], sizes = [8, 128], strides = [1, 1]} : vector<8x512xf32> to vector<8x128xf32>
    %25 = arith.negf %24 : vector<8x128xf32>
    %26 = math.exp %25 : vector<8x128xf32>
    %cst_18 = arith.constant 1.000000e+00 : f32
    %27 = vector.broadcast %cst_18 : f32 to vector<8x128xf32>
    %28 = arith.addf %27, %26 : vector<8x128xf32>
    %29 = arith.divf %27, %28 : vector<8x128xf32>
    %30 = vector.extract_strided_slice %17 {offsets = [0, 256], sizes = [8, 128], strides = [1, 1]} : vector<8x512xf32> to vector<8x128xf32>
    %31 = math.tanh %30 : vector<8x128xf32>
    %32 = vector.extract_strided_slice %17 {offsets = [0, 384], sizes = [8, 128], strides = [1, 1]} : vector<8x512xf32> to vector<8x128xf32>
    %33 = arith.negf %32 : vector<8x128xf32>
    %34 = math.exp %33 : vector<8x128xf32>
    %cst_19 = arith.constant 1.000000e+00 : f32
    %35 = vector.broadcast %cst_19 : f32 to vector<8x128xf32>
    %36 = arith.addf %35, %34 : vector<8x128xf32>
    %37 = arith.divf %35, %36 : vector<8x128xf32>
    %38 = arith.mulf %29, %12 : vector<8x128xf32>
    %39 = arith.mulf %23, %31 : vector<8x128xf32>
    %40 = arith.addf %38, %39 : vector<8x128xf32>
    %41 = math.tanh %40 : vector<8x128xf32>
    %42 = arith.mulf %37, %41 : vector<8x128xf32>
    %c1 = arith.constant 1 : index
    %c0_20 = arith.constant 0 : index
    %c0_21 = arith.constant 0 : index
    %43 = vector.load %arg8[%c1, %c0_20, %c0_21] : memref<8x8x512xf32, #tpu.memory_space<vmem>>, vector<1x8x512xf32>
    %44 = vector.shape_cast %43 : vector<1x8x512xf32> to vector<8x512xf32>
    %45 = arith.truncf %42 : vector<8x128xf32> to vector<8x128xbf16>
    %cst_22 = arith.constant dense<0.000000e+00> : vector<8x512xf32>
    %46 = tpu.matmul %45, %10, %cst_22 {dimension_numbers = #tpu.dot_dimension_numbers<[1], [0], [0], [1], [0, 0, 1, 1], [], []>} : vector<8x128xbf16>, vector<128x512xbf16>, vector<8x512xf32> -> vector<8x512xf32>
    %47 = arith.addf %44, %46 : vector<8x512xf32>
    %48 = vector.extract_strided_slice %47 {offsets = [0, 0], sizes = [8, 128], strides = [1, 1]} : vector<8x512xf32> to vector<8x128xf32>
    %49 = arith.negf %48 : vector<8x128xf32>
    %50 = math.exp %49 : vector<8x128xf32>
    %cst_23 = arith.constant 1.000000e+00 : f32
    %51 = vector.broadcast %cst_23 : f32 to vector<8x128xf32>
    %52 = arith.addf %51, %50 : vector<8x128xf32>
    %53 = arith.divf %51, %52 : vector<8x128xf32>
    %54 = vector.extract_strided_slice %47 {offsets = [0, 128], sizes = [8, 128], strides = [1, 1]} : vector<8x512xf32> to vector<8x128xf32>
    %55 = arith.negf %54 : vector<8x128xf32>
    %56 = math.exp %55 : vector<8x128xf32>
    %cst_24 = arith.constant 1.000000e+00 : f32
    %57 = vector.broadcast %cst_24 : f32 to vector<8x128xf32>
    %58 = arith.addf %57, %56 : vector<8x128xf32>
    %59 = arith.divf %57, %58 : vector<8x128xf32>
    %60 = vector.extract_strided_slice %47 {offsets = [0, 256], sizes = [8, 128], strides = [1, 1]} : vector<8x512xf32> to vector<8x128xf32>
    %61 = math.tanh %60 : vector<8x128xf32>
    %62 = vector.extract_strided_slice %47 {offsets = [0, 384], sizes = [8, 128], strides = [1, 1]} : vector<8x512xf32> to vector<8x128xf32>
    %63 = arith.negf %62 : vector<8x128xf32>
    %64 = math.exp %63 : vector<8x128xf32>
    %cst_25 = arith.constant 1.000000e+00 : f32
    %65 = vector.broadcast %cst_25 : f32 to vector<8x128xf32>
    %66 = arith.addf %65, %64 : vector<8x128xf32>
    %67 = arith.divf %65, %66 : vector<8x128xf32>
    %68 = arith.mulf %59, %40 : vector<8x128xf32>
    %69 = arith.mulf %53, %61 : vector<8x128xf32>
    %70 = arith.addf %68, %69 : vector<8x128xf32>
    %71 = math.tanh %70 : vector<8x128xf32>
    %72 = arith.mulf %67, %71 : vector<8x128xf32>
    %c2 = arith.constant 2 : index
    %c0_26 = arith.constant 0 : index
    %c0_27 = arith.constant 0 : index
    %73 = vector.load %arg8[%c2, %c0_26, %c0_27] : memref<8x8x512xf32, #tpu.memory_space<vmem>>, vector<1x8x512xf32>
    %74 = vector.shape_cast %73 : vector<1x8x512xf32> to vector<8x512xf32>
    %75 = arith.truncf %72 : vector<8x128xf32> to vector<8x128xbf16>
    %cst_28 = arith.constant dense<0.000000e+00> : vector<8x512xf32>
    %76 = tpu.matmul %75, %10, %cst_28 {dimension_numbers = #tpu.dot_dimension_numbers<[1], [0], [0], [1], [0, 0, 1, 1], [], []>} : vector<8x128xbf16>, vector<128x512xbf16>, vector<8x512xf32> -> vector<8x512xf32>
    %77 = arith.addf %74, %76 : vector<8x512xf32>
    %78 = vector.extract_strided_slice %77 {offsets = [0, 0], sizes = [8, 128], strides = [1, 1]} : vector<8x512xf32> to vector<8x128xf32>
    %79 = arith.negf %78 : vector<8x128xf32>
    %80 = math.exp %79 : vector<8x128xf32>
    %cst_29 = arith.constant 1.000000e+00 : f32
    %81 = vector.broadcast %cst_29 : f32 to vector<8x128xf32>
    %82 = arith.addf %81, %80 : vector<8x128xf32>
    %83 = arith.divf %81, %82 : vector<8x128xf32>
    %84 = vector.extract_strided_slice %77 {offsets = [0, 128], sizes = [8, 128], strides = [1, 1]} : vector<8x512xf32> to vector<8x128xf32>
    %85 = arith.negf %84 : vector<8x128xf32>
    %86 = math.exp %85 : vector<8x128xf32>
    %cst_30 = arith.constant 1.000000e+00 : f32
    %87 = vector.broadcast %cst_30 : f32 to vector<8x128xf32>
    %88 = arith.addf %87, %86 : vector<8x128xf32>
    %89 = arith.divf %87, %88 : vector<8x128xf32>
    %90 = vector.extract_strided_slice %77 {offsets = [0, 256], sizes = [8, 128], strides = [1, 1]} : vector<8x512xf32> to vector<8x128xf32>
    %91 = math.tanh %90 : vector<8x128xf32>
    %92 = vector.extract_strided_slice %77 {offsets = [0, 384], sizes = [8, 128], strides = [1, 1]} : vector<8x512xf32> to vector<8x128xf32>
    %93 = arith.negf %92 : vector<8x128xf32>
    %94 = math.exp %93 : vector<8x128xf32>
    %cst_31 = arith.constant 1.000000e+00 : f32
    %95 = vector.broadcast %cst_31 : f32 to vector<8x128xf32>
    %96 = arith.addf %95, %94 : vector<8x128xf32>
    %97 = arith.divf %95, %96 : vector<8x128xf32>
    %98 = arith.mulf %89, %70 : vector<8x128xf32>
    %99 = arith.mulf %83, %91 : vector<8x128xf32>
    %100 = arith.addf %98, %99 : vector<8x128xf32>
    %101 = math.tanh %100 : vector<8x128xf32>
    %102 = arith.mulf %97, %101 : vector<8x128xf32>
    %c3 = arith.constant 3 : index
    %c0_32 = arith.constant 0 : index
    %c0_33 = arith.constant 0 : index
    %103 = vector.load %arg8[%c3, %c0_32, %c0_33] : memref<8x8x512xf32, #tpu.memory_space<vmem>>, vector<1x8x512xf32>
    %104 = vector.shape_cast %103 : vector<1x8x512xf32> to vector<8x512xf32>
    %105 = arith.truncf %102 : vector<8x128xf32> to vector<8x128xbf16>
    %cst_34 = arith.constant dense<0.000000e+00> : vector<8x512xf32>
    %106 = tpu.matmul %105, %10, %cst_34 {dimension_numbers = #tpu.dot_dimension_numbers<[1], [0], [0], [1], [0, 0, 1, 1], [], []>} : vector<8x128xbf16>, vector<128x512xbf16>, vector<8x512xf32> -> vector<8x512xf32>
    %107 = arith.addf %104, %106 : vector<8x512xf32>
    %108 = vector.extract_strided_slice %107 {offsets = [0, 0], sizes = [8, 128], strides = [1, 1]} : vector<8x512xf32> to vector<8x128xf32>
    %109 = arith.negf %108 : vector<8x128xf32>
    %110 = math.exp %109 : vector<8x128xf32>
    %cst_35 = arith.constant 1.000000e+00 : f32
    %111 = vector.broadcast %cst_35 : f32 to vector<8x128xf32>
    %112 = arith.addf %111, %110 : vector<8x128xf32>
    %113 = arith.divf %111, %112 : vector<8x128xf32>
    %114 = vector.extract_strided_slice %107 {offsets = [0, 128], sizes = [8, 128], strides = [1, 1]} : vector<8x512xf32> to vector<8x128xf32>
    %115 = arith.negf %114 : vector<8x128xf32>
    %116 = math.exp %115 : vector<8x128xf32>
    %cst_36 = arith.constant 1.000000e+00 : f32
    %117 = vector.broadcast %cst_36 : f32 to vector<8x128xf32>
    %118 = arith.addf %117, %116 : vector<8x128xf32>
    %119 = arith.divf %117, %118 : vector<8x128xf32>
    %120 = vector.extract_strided_slice %107 {offsets = [0, 256], sizes = [8, 128], strides = [1, 1]} : vector<8x512xf32> to vector<8x128xf32>
    %121 = math.tanh %120 : vector<8x128xf32>
    %122 = vector.extract_strided_slice %107 {offsets = [0, 384], sizes = [8, 128], strides = [1, 1]} : vector<8x512xf32> to vector<8x128xf32>
    %123 = arith.negf %122 : vector<8x128xf32>
    %124 = math.exp %123 : vector<8x128xf32>
    %cst_37 = arith.constant 1.000000e+00 : f32
    %125 = vector.broadcast %cst_37 : f32 to vector<8x128xf32>
    %126 = arith.addf %125, %124 : vector<8x128xf32>
    %127 = arith.divf %125, %126 : vector<8x128xf32>
    %128 = arith.mulf %119, %100 : vector<8x128xf32>
    %129 = arith.mulf %113, %121 : vector<8x128xf32>
    %130 = arith.addf %128, %129 : vector<8x128xf32>
    %131 = math.tanh %130 : vector<8x128xf32>
    %132 = arith.mulf %127, %131 : vector<8x128xf32>
    %c4 = arith.constant 4 : index
    %c0_38 = arith.constant 0 : index
    %c0_39 = arith.constant 0 : index
    %133 = vector.load %arg8[%c4, %c0_38, %c0_39] : memref<8x8x512xf32, #tpu.memory_space<vmem>>, vector<1x8x512xf32>
    %134 = vector.shape_cast %133 : vector<1x8x512xf32> to vector<8x512xf32>
    %135 = arith.truncf %132 : vector<8x128xf32> to vector<8x128xbf16>
    %cst_40 = arith.constant dense<0.000000e+00> : vector<8x512xf32>
    %136 = tpu.matmul %135, %10, %cst_40 {dimension_numbers = #tpu.dot_dimension_numbers<[1], [0], [0], [1], [0, 0, 1, 1], [], []>} : vector<8x128xbf16>, vector<128x512xbf16>, vector<8x512xf32> -> vector<8x512xf32>
    %137 = arith.addf %134, %136 : vector<8x512xf32>
    %138 = vector.extract_strided_slice %137 {offsets = [0, 0], sizes = [8, 128], strides = [1, 1]} : vector<8x512xf32> to vector<8x128xf32>
    %139 = arith.negf %138 : vector<8x128xf32>
    %140 = math.exp %139 : vector<8x128xf32>
    %cst_41 = arith.constant 1.000000e+00 : f32
    %141 = vector.broadcast %cst_41 : f32 to vector<8x128xf32>
    %142 = arith.addf %141, %140 : vector<8x128xf32>
    %143 = arith.divf %141, %142 : vector<8x128xf32>
    %144 = vector.extract_strided_slice %137 {offsets = [0, 128], sizes = [8, 128], strides = [1, 1]} : vector<8x512xf32> to vector<8x128xf32>
    %145 = arith.negf %144 : vector<8x128xf32>
    %146 = math.exp %145 : vector<8x128xf32>
    %cst_42 = arith.constant 1.000000e+00 : f32
    %147 = vector.broadcast %cst_42 : f32 to vector<8x128xf32>
    %148 = arith.addf %147, %146 : vector<8x128xf32>
    %149 = arith.divf %147, %148 : vector<8x128xf32>
    %150 = vector.extract_strided_slice %137 {offsets = [0, 256], sizes = [8, 128], strides = [1, 1]} : vector<8x512xf32> to vector<8x128xf32>
    %151 = math.tanh %150 : vector<8x128xf32>
    %152 = vector.extract_strided_slice %137 {offsets = [0, 384], sizes = [8, 128], strides = [1, 1]} : vector<8x512xf32> to vector<8x128xf32>
    %153 = arith.negf %152 : vector<8x128xf32>
    %154 = math.exp %153 : vector<8x128xf32>
    %cst_43 = arith.constant 1.000000e+00 : f32
    %155 = vector.broadcast %cst_43 : f32 to vector<8x128xf32>
    %156 = arith.addf %155, %154 : vector<8x128xf32>
    %157 = arith.divf %155, %156 : vector<8x128xf32>
    %158 = arith.mulf %149, %130 : vector<8x128xf32>
    %159 = arith.mulf %143, %151 : vector<8x128xf32>
    %160 = arith.addf %158, %159 : vector<8x128xf32>
    %161 = math.tanh %160 : vector<8x128xf32>
    %162 = arith.mulf %157, %161 : vector<8x128xf32>
    %c5 = arith.constant 5 : index
    %c0_44 = arith.constant 0 : index
    %c0_45 = arith.constant 0 : index
    %163 = vector.load %arg8[%c5, %c0_44, %c0_45] : memref<8x8x512xf32, #tpu.memory_space<vmem>>, vector<1x8x512xf32>
    %164 = vector.shape_cast %163 : vector<1x8x512xf32> to vector<8x512xf32>
    %165 = arith.truncf %162 : vector<8x128xf32> to vector<8x128xbf16>
    %cst_46 = arith.constant dense<0.000000e+00> : vector<8x512xf32>
    %166 = tpu.matmul %165, %10, %cst_46 {dimension_numbers = #tpu.dot_dimension_numbers<[1], [0], [0], [1], [0, 0, 1, 1], [], []>} : vector<8x128xbf16>, vector<128x512xbf16>, vector<8x512xf32> -> vector<8x512xf32>
    %167 = arith.addf %164, %166 : vector<8x512xf32>
    %168 = vector.extract_strided_slice %167 {offsets = [0, 0], sizes = [8, 128], strides = [1, 1]} : vector<8x512xf32> to vector<8x128xf32>
    %169 = arith.negf %168 : vector<8x128xf32>
    %170 = math.exp %169 : vector<8x128xf32>
    %cst_47 = arith.constant 1.000000e+00 : f32
    %171 = vector.broadcast %cst_47 : f32 to vector<8x128xf32>
    %172 = arith.addf %171, %170 : vector<8x128xf32>
    %173 = arith.divf %171, %172 : vector<8x128xf32>
    %174 = vector.extract_strided_slice %167 {offsets = [0, 128], sizes = [8, 128], strides = [1, 1]} : vector<8x512xf32> to vector<8x128xf32>
    %175 = arith.negf %174 : vector<8x128xf32>
    %176 = math.exp %175 : vector<8x128xf32>
    %cst_48 = arith.constant 1.000000e+00 : f32
    %177 = vector.broadcast %cst_48 : f32 to vector<8x128xf32>
    %178 = arith.addf %177, %176 : vector<8x128xf32>
    %179 = arith.divf %177, %178 : vector<8x128xf32>
    %180 = vector.extract_strided_slice %167 {offsets = [0, 256], sizes = [8, 128], strides = [1, 1]} : vector<8x512xf32> to vector<8x128xf32>
    %181 = math.tanh %180 : vector<8x128xf32>
    %182 = vector.extract_strided_slice %167 {offsets = [0, 384], sizes = [8, 128], strides = [1, 1]} : vector<8x512xf32> to vector<8x128xf32>
    %183 = arith.negf %182 : vector<8x128xf32>
    %184 = math.exp %183 : vector<8x128xf32>
    %cst_49 = arith.constant 1.000000e+00 : f32
    %185 = vector.broadcast %cst_49 : f32 to vector<8x128xf32>
    %186 = arith.addf %185, %184 : vector<8x128xf32>
    %187 = arith.divf %185, %186 : vector<8x128xf32>
    %188 = arith.mulf %179, %160 : vector<8x128xf32>
    %189 = arith.mulf %173, %181 : vector<8x128xf32>
    %190 = arith.addf %188, %189 : vector<8x128xf32>
    %191 = math.tanh %190 : vector<8x128xf32>
    %192 = arith.mulf %187, %191 : vector<8x128xf32>
    %c6 = arith.constant 6 : index
    %c0_50 = arith.constant 0 : index
    %c0_51 = arith.constant 0 : index
    %193 = vector.load %arg8[%c6, %c0_50, %c0_51] : memref<8x8x512xf32, #tpu.memory_space<vmem>>, vector<1x8x512xf32>
    %194 = vector.shape_cast %193 : vector<1x8x512xf32> to vector<8x512xf32>
    %195 = arith.truncf %192 : vector<8x128xf32> to vector<8x128xbf16>
    %cst_52 = arith.constant dense<0.000000e+00> : vector<8x512xf32>
    %196 = tpu.matmul %195, %10, %cst_52 {dimension_numbers = #tpu.dot_dimension_numbers<[1], [0], [0], [1], [0, 0, 1, 1], [], []>} : vector<8x128xbf16>, vector<128x512xbf16>, vector<8x512xf32> -> vector<8x512xf32>
    %197 = arith.addf %194, %196 : vector<8x512xf32>
    %198 = vector.extract_strided_slice %197 {offsets = [0, 0], sizes = [8, 128], strides = [1, 1]} : vector<8x512xf32> to vector<8x128xf32>
    %199 = arith.negf %198 : vector<8x128xf32>
    %200 = math.exp %199 : vector<8x128xf32>
    %cst_53 = arith.constant 1.000000e+00 : f32
    %201 = vector.broadcast %cst_53 : f32 to vector<8x128xf32>
    %202 = arith.addf %201, %200 : vector<8x128xf32>
    %203 = arith.divf %201, %202 : vector<8x128xf32>
    %204 = vector.extract_strided_slice %197 {offsets = [0, 128], sizes = [8, 128], strides = [1, 1]} : vector<8x512xf32> to vector<8x128xf32>
    %205 = arith.negf %204 : vector<8x128xf32>
    %206 = math.exp %205 : vector<8x128xf32>
    %cst_54 = arith.constant 1.000000e+00 : f32
    %207 = vector.broadcast %cst_54 : f32 to vector<8x128xf32>
    %208 = arith.addf %207, %206 : vector<8x128xf32>
    %209 = arith.divf %207, %208 : vector<8x128xf32>
    %210 = vector.extract_strided_slice %197 {offsets = [0, 256], sizes = [8, 128], strides = [1, 1]} : vector<8x512xf32> to vector<8x128xf32>
    %211 = math.tanh %210 : vector<8x128xf32>
    %212 = vector.extract_strided_slice %197 {offsets = [0, 384], sizes = [8, 128], strides = [1, 1]} : vector<8x512xf32> to vector<8x128xf32>
    %213 = arith.negf %212 : vector<8x128xf32>
    %214 = math.exp %213 : vector<8x128xf32>
    %cst_55 = arith.constant 1.000000e+00 : f32
    %215 = vector.broadcast %cst_55 : f32 to vector<8x128xf32>
    %216 = arith.addf %215, %214 : vector<8x128xf32>
    %217 = arith.divf %215, %216 : vector<8x128xf32>
    %218 = arith.mulf %209, %190 : vector<8x128xf32>
    %219 = arith.mulf %203, %211 : vector<8x128xf32>
    %220 = arith.addf %218, %219 : vector<8x128xf32>
    %221 = math.tanh %220 : vector<8x128xf32>
    %222 = arith.mulf %217, %221 : vector<8x128xf32>
    %c7 = arith.constant 7 : index
    %c0_56 = arith.constant 0 : index
    %c0_57 = arith.constant 0 : index
    %223 = vector.load %arg8[%c7, %c0_56, %c0_57] : memref<8x8x512xf32, #tpu.memory_space<vmem>>, vector<1x8x512xf32>
    %224 = vector.shape_cast %223 : vector<1x8x512xf32> to vector<8x512xf32>
    %225 = arith.truncf %222 : vector<8x128xf32> to vector<8x128xbf16>
    %cst_58 = arith.constant dense<0.000000e+00> : vector<8x512xf32>
    %226 = tpu.matmul %225, %10, %cst_58 {dimension_numbers = #tpu.dot_dimension_numbers<[1], [0], [0], [1], [0, 0, 1, 1], [], []>} : vector<8x128xbf16>, vector<128x512xbf16>, vector<8x512xf32> -> vector<8x512xf32>
    %227 = arith.addf %224, %226 : vector<8x512xf32>
    %228 = vector.extract_strided_slice %227 {offsets = [0, 0], sizes = [8, 128], strides = [1, 1]} : vector<8x512xf32> to vector<8x128xf32>
    %229 = arith.negf %228 : vector<8x128xf32>
    %230 = math.exp %229 : vector<8x128xf32>
    %cst_59 = arith.constant 1.000000e+00 : f32
    %231 = vector.broadcast %cst_59 : f32 to vector<8x128xf32>
    %232 = arith.addf %231, %230 : vector<8x128xf32>
    %233 = arith.divf %231, %232 : vector<8x128xf32>
    %234 = vector.extract_strided_slice %227 {offsets = [0, 128], sizes = [8, 128], strides = [1, 1]} : vector<8x512xf32> to vector<8x128xf32>
    %235 = arith.negf %234 : vector<8x128xf32>
    %236 = math.exp %235 : vector<8x128xf32>
    %cst_60 = arith.constant 1.000000e+00 : f32
    %237 = vector.broadcast %cst_60 : f32 to vector<8x128xf32>
    %238 = arith.addf %237, %236 : vector<8x128xf32>
    %239 = arith.divf %237, %238 : vector<8x128xf32>
    %240 = vector.extract_strided_slice %227 {offsets = [0, 256], sizes = [8, 128], strides = [1, 1]} : vector<8x512xf32> to vector<8x128xf32>
    %241 = math.tanh %240 : vector<8x128xf32>
    %242 = vector.extract_strided_slice %227 {offsets = [0, 384], sizes = [8, 128], strides = [1, 1]} : vector<8x512xf32> to vector<8x128xf32>
    %243 = arith.negf %242 : vector<8x128xf32>
    %244 = math.exp %243 : vector<8x128xf32>
    %cst_61 = arith.constant 1.000000e+00 : f32
    %245 = vector.broadcast %cst_61 : f32 to vector<8x128xf32>
    %246 = arith.addf %245, %244 : vector<8x128xf32>
    %247 = arith.divf %245, %246 : vector<8x128xf32>
    %248 = arith.mulf %239, %220 : vector<8x128xf32>
    %249 = arith.mulf %233, %241 : vector<8x128xf32>
    %250 = arith.addf %248, %249 : vector<8x128xf32>
    %251 = math.tanh %250 : vector<8x128xf32>
    %252 = arith.mulf %247, %251 : vector<8x128xf32>
    %253 = arith.truncf %252 : vector<8x128xf32> to vector<8x128xbf16>
    %c0_62 = arith.constant 0 : index
    %c0_63 = arith.constant 0 : index
    %254 = vector.load %arg5[%c0_62, %c0_63] : memref<128x128xbf16, #tpu.memory_space<vmem>>, vector<128x128xbf16>
    %cst_64 = arith.constant dense<0.000000e+00> : vector<8x128xf32>
    %255 = tpu.matmul %253, %254, %cst_64 {dimension_numbers = #tpu.dot_dimension_numbers<[1], [0], [0], [1], [0, 0, 1, 1], [], []>} : vector<8x128xbf16>, vector<128x128xbf16>, vector<8x128xf32> -> vector<8x128xf32>
    %c0_65 = arith.constant 0 : index
    %c0_66 = arith.constant 0 : index
    %256 = vector.load %arg6[%c0_65, %c0_66] : memref<1x128xf32, #tpu.memory_space<vmem>>, vector<1x128xf32>
    %257 = vector.broadcast %256 : vector<1x128xf32> to vector<8x128xf32>
    %258 = arith.addf %255, %257 : vector<8x128xf32>
    %259 = tpu.iota {dimensions = array<i32: 1>} : vector<8x128xi32>
    %c8_i32 = arith.constant 8 : i32
    %260 = vector.broadcast %c8_i32 : i32 to vector<8x128xi32>
    %261 = arith.cmpi slt, %259, %260 : vector<8x128xi32>
    %cst_67 = arith.constant -1.000000e+30 : f32
    %262 = vector.broadcast %cst_67 : f32 to vector<8x128xf32>
    %263 = arith.select %261, %258, %262 : vector<8x128xi1>, vector<8x128xf32>
    %cst_68 = arith.constant dense<0xFF800000> : vector<8xf32>
    %264 = vector.multi_reduction <maximumf>, %263, %cst_68 [1] : vector<8x128xf32> to vector<8xf32>
    %265 = vector.shape_cast %264 : vector<8xf32> to vector<8x1xf32>
    %266 = vector.broadcast %265 : vector<8x1xf32> to vector<8x128xf32>
    %267 = arith.subf %263, %266 : vector<8x128xf32>
    %268 = math.exp %267 : vector<8x128xf32>
    %cst_69 = arith.constant dense<0.000000e+00> : vector<8xf32>
    %269 = vector.multi_reduction <add>, %268, %cst_69 [1] : vector<8x128xf32> to vector<8xf32>
    %270 = vector.shape_cast %269 : vector<8xf32> to vector<8x1xf32>
    %271 = vector.broadcast %270 : vector<8x1xf32> to vector<8x128xf32>
    %272 = arith.divf %268, %271 : vector<8x128xf32>
    %c0_70 = arith.constant 0 : index
    %c0_71 = arith.constant 0 : index
    %273 = vector.load %arg7[%c0_70, %c0_71] : memref<8x128xf32, #tpu.memory_space<vmem>>, vector<8x128xf32>
    tpu.vector_store %arg7[%c0_70, %c0_71], %272 {strides = array<i32>} : memref<8x128xf32, #tpu.memory_space<vmem>>, vector<8x128xf32>,
    return
  }
  func.func @transform_0(%arg0: i32) -> (i32, i32, i32) {
    %c0_i32 = arith.constant 0 : i32
    %c0_i32_0 = arith.constant 0 : i32
    %c0_i32_1 = arith.constant 0 : i32
    return %c0_i32, %arg0, %c0_i32_0 : i32, i32, i32
  }
  func.func @transform_1(%arg0: i32) -> (i32, i32) {
    %c0_i32 = arith.constant 0 : i32
    %c0_i32_0 = arith.constant 0 : i32
    %c0_i32_1 = arith.constant 0 : i32
    return %c0_i32, %c0_i32_0 : i32, i32
  }
  func.func @transform_2(%arg0: i32) -> (i32, i32) {
    %c0_i32 = arith.constant 0 : i32
    %c0_i32_0 = arith.constant 0 : i32
    %c0_i32_1 = arith.constant 0 : i32
    return %c0_i32, %c0_i32_0 : i32, i32
  }
  func.func @transform_3(%arg0: i32) -> (i32, i32) {
    %c0_i32 = arith.constant 0 : i32
    %c0_i32_0 = arith.constant 0 : i32
    %c0_i32_1 = arith.constant 0 : i32
    return %c0_i32, %c0_i32_0 : i32, i32
  }
  func.func @transform_4(%arg0: i32) -> (i32, i32) {
    %c0_i32 = arith.constant 0 : i32
    %c0_i32_0 = arith.constant 0 : i32
    %c0_i32_1 = arith.constant 0 : i32
    return %c0_i32, %c0_i32_0 : i32, i32
  }
  func.func @transform_5(%arg0: i32) -> (i32, i32) {
    %c0_i32 = arith.constant 0 : i32
    %c0_i32_0 = arith.constant 0 : i32
    %c0_i32_1 = arith.constant 0 : i32
    return %c0_i32, %c0_i32_0 : i32, i32
  }
  func.func @transform_6(%arg0: i32) -> (i32, i32) {
    %c0_i32 = arith.constant 0 : i32
    %c0_i32_0 = arith.constant 0 : i32
    return %arg0, %c0_i32 : i32, i32
  }
}

</mosaic_0001>

<llo_original>
// kernel: forward.1
$region0: #{forward.1}
  #allocation0 [shape = 'u32[]', space=smem, size = 0x4, offset = 0x4, fixed_abs, tag = 'smem constant byte address 0x4 - core index']
  #allocation1 [shape = 'u32[144,128]{1,0:T(1,128)}', space=vmem, size = 0x12000, scoped, tag = 'internal scratch']
  #allocation2 [shape = 'f32[8,8,512]{2,1,0:T(8,128)}', space=vmem, size = 0x20000, scoped, tag = 'scratch operand']
  %s0 = inlined_call_operand.vmem [shape: f32[8,8,16], index: 0, kind: input, shape index: {}]
  %s1 = inlined_call_operand.vmem [shape: bf16[16,512], index: 1, kind: input, shape index: {}]
  %s2 = inlined_call_operand.hbm [shape: bf16[128,512], index: 2, kind: input, shape index: {}]
  %s3 = inlined_call_operand.vmem [shape: f32[1,512], index: 3, kind: input, shape index: {}]
  %s4 = inlined_call_operand.vmem [shape: bf16[128,128], index: 4, kind: input, shape index: {}]
  %s5 = inlined_call_operand.vmem [shape: f32[1,128], index: 5, kind: input, shape index: {}]
  %s6 = inlined_call_operand.vmem [shape: f32[8,128], index: 6, kind: output, shape index: {}]
  %s7 = sld [smem:[#allocation0]]
  $region38: #{forward.1} parent=0
    _
  %s9 = ssub.s32 1, %s7
  %s10 = scalar_select 0, %s9, %s7
  $region1: #{forward.1} parent=0
    #allocation3 [shape = 'u8[131072]{0}', space=vmem, size = 0x20000, scoped, tag = 'input window, operand 2, single buffered']
    #allocation4 [shape = 's32[1]{0}', space=sflag, size = 0x4, scoped, tag = 'scoped memory for forward.1']
    %11 = vsyncpa [#allocation4], 0
    // Predicated region
    $region2: #{forward.1} parent=1 // pred_check
      _
    $region3: #{forward.1} parent=1 // pred_check_branch
      %13 = sbr.rel (0) target = $region5
    $region4: #{forward.1} parent=1 // pred_region
      _
    $region5: #{forward.1} parent=1 // pred_fallthru
      _
    // Predicated region
    $region6: #{forward.1} parent=1 // pred_check
      _
    $region7: #{forward.1} parent=1 // pred_check_branch
      %15 = sbr.rel (0) target = $region9
    $region8: #{forward.1} parent=1 // pred_region
      _
    $region9: #{forward.1} parent=1 // pred_fallthru
      _
    // Predicated region
    $region10: #{forward.1} parent=1 // pred_check
      _
    $region11: #{forward.1} parent=1 // pred_check_branch
      %17 = sbr.rel (0) target = $region13
    $region12: #{forward.1} parent=1 // pred_region
      %s19 = ssub.s32 4096, 4096
      %20 = vsyncadd [#allocation4], %s19
      %s21 = sshll.u32 [#allocation3], 4
      %s22 = int_to_ptr.vmem [resolvable:$true] %s21
      %27 = dma.hbm_to_vmem [thread:$0]  %s2, 4096, %s22, [#allocation4], 256, 256, 16
    $region13: #{forward.1} parent=1 // pred_fallthru
      _
    // Predicated region
    $region14: #{forward.1} parent=1 // pred_check
      _
    $region15: #{forward.1} parent=1 // pred_check_branch
      %29 = sbr.rel (0) target = $region17
    $region16: #{forward.1} parent=1 // pred_region
      _
    $region17: #{forward.1} parent=1 // pred_fallthru
      _
    // Predicated region
    $region18: #{forward.1} parent=1 // pred_check
      _
    $region19: #{forward.1} parent=1 // pred_check_branch
      %31 = sbr.rel (0) target = $region21
    $region20: #{forward.1} parent=1 // pred_region
      _
    $region21: #{forward.1} parent=1 // pred_fallthru
      _
    // Predicated region
    $region22: #{forward.1} parent=1 // pred_check
      _
    $region23: #{forward.1} parent=1 // pred_check_branch
      %33 = sbr.rel (0) target = $region25
    $region24: #{forward.1} parent=1 // pred_region
      _
    $region25: #{forward.1} parent=1 // pred_fallthru
      _
    // Predicated region
    $region26: #{forward.1} parent=1 // pred_check
      _
    $region27: #{forward.1} parent=1 // pred_check_branch
      %35 = sbr.rel (0) target = $region29
    $region28: #{forward.1} parent=1 // pred_region
      %36 = dma.done [#allocation4], 4096
    $region29: #{forward.1} parent=1 // pred_fallthru
      _
    %v38 = vld [vmem:[%s0] sm:$0xff]
    %v39 = vld [vmem:[%s0 + $0x8] sm:$0xff]
    %v40 = vld [vmem:[%s0 + $0x10] sm:$0xff]
    %v41 = vld [vmem:[%s0 + $0x18] sm:$0xff]
    %v42 = vld [vmem:[%s0 + $0x20] sm:$0xff]
    %v43 = vld [vmem:[%s0 + $0x28] sm:$0xff]
    %v44 = vld [vmem:[%s0 + $0x30] sm:$0xff]
    %v45 = vld [vmem:[%s0 + $0x38] sm:$0xff]
    %v46 = vpack.c.bf16 %v39, %v38
    %v47 = vpack.c.bf16 %v41, %v40
    %v48 = vpack.c.bf16 %v43, %v42
    %v49 = vpack.c.bf16 %v45, %v44
    %v50 = vld [vmem:[%s1] sm:$0xff]
    %v51 = vld [vmem:[%s1 + $0x8] sm:$0xff]
    %v52 = vld [vmem:[%s1 + $0x10] sm:$0xff]
    %v53 = vld [vmem:[%s1 + $0x18] sm:$0xff]
    %v54 = vld [vmem:[%s3] sm:$0xf]
    %v56 = vlaneseq
    %v57 = vshrl.u32 %v56, 7
    %v58 = vsub.s32 0, %v57
    %v59 = vrot.slane %v54, %v58
    %v60 = vlaneseq
    %v61 = vshrl.u32 %v60, 7
    %v62 = vsub.s32 1, %v61
    %v63 = vrot.slane %v54, %v62
    %v64 = vlaneseq
    %v65 = vshrl.u32 %v64, 7
    %v66 = vsub.s32 2, %v65
    %v67 = vrot.slane %v54, %v66
    %v68 = vlaneseq
    %v69 = vshrl.u32 %v68, 7
    %v70 = vsub.s32 3, %v69
    %v71 = vrot.slane %v54, %v70
    %v80 = vunpack.c.l.b16 %v50
    %v81 = vunpack.c.h.b16 %v50
    %v82 = vunpack.c.l.b16 %v51
    %v83 = vunpack.c.h.b16 %v51
    %v84 = vunpack.c.l.b16 %v52
    %v85 = vunpack.c.h.b16 %v52
    %v86 = vunpack.c.l.b16 %v53
    %v87 = vunpack.c.h.b16 %v53
    %v88 = vpack.c.b16 %v84, %v80
    %v89 = vpack.c.b16 %v85, %v81
    %v90 = vpack.c.b16 %v86, %v82
    %v91 = vpack.c.b16 %v87, %v83
    %vm96 = vcmask 130048
    %v98 = vsel %vm96, %v46, 0
    %v101 = vsel %vm96, %v47, 0
    %v104 = vsel %vm96, %v48, 0
    %v107 = vsel %vm96, %v49, 0
    %109 = vmatprep.subr.bf16.mxu0 0
    %110 = vmatpush1.bf16.msra.mxu0 0
    %111 = vmatprep.subr.bf16.mxu0 0
    %112 = vmatpush1.bf16.msra.mxu0 0
    %113 = vmatprep.subr.bf16.mxu0 0
    %114 = vmatpush1.bf16.msra.mxu0 0
    %115 = vmatprep.subr.bf16.mxu0 0
    %116 = vmatpush1.bf16.msra.mxu0 0
    %117 = vmatprep.subr.bf16.mxu0 0
    %118 = vmatpush1.bf16.msra.mxu0 0
    %119 = vmatprep.subr.bf16.mxu0 0
    %120 = vmatpush1.bf16.msra.mxu0 0
    %121 = vmatprep.subr.bf16.mxu0 0
    %122 = vmatpush1.bf16.msra.mxu0 0
    %123 = vmatprep.subr.bf16.mxu0 %v89
    %124 = vmatpush1.bf16.msra.mxu0 %v88
    %125 = vmatprep.subr.bf16.mxu0 0
    %126 = vmatpush2.bf16.msra.mxu0 0
    %127 = vmatprep.subr.bf16.mxu0 0
    %128 = vmatpush2.bf16.msra.mxu0 0
    %129 = vmatprep.subr.bf16.mxu0 0
    %130 = vmatpush2.bf16.msra.mxu0 0
    %131 = vmatprep.subr.bf16.mxu0 0
    %132 = vmatpush2.bf16.msra.mxu0 0
    %133 = vmatprep.subr.bf16.mxu0 0
    %134 = vmatpush2.bf16.msra.mxu0 0
    %135 = vmatprep.subr.bf16.mxu0 0
    %136 = vmatpush2.bf16.msra.mxu0 0
    %137 = vmatprep.subr.bf16.mxu0 0
    %138 = vmatpush2.bf16.msra.mxu0 0
    %139 = vmatprep.subr.bf16.mxu0 0
    %140 = vmatpush2.bf16.msra.mxu0 0
    %141 = vmatprep.mubr.bf16.mxu0 0
    %142 = vmatmul.mubr.bf16.gmra.mxu0 %v98
    %v143 = vpop.f32.mrf.mxu0
    %v144 = vadd.f32 %v59, %v143
    %v145 = vpop.f32.mrf.mxu0
    %v146 = vadd.f32 %v63, %v145
    %v147 = vpop.f32.mrf.mxu0
    %v148 = vadd.f32 %v59, %v147
    %v149 = vpop.f32.mrf.mxu0
    %v150 = vadd.f32 %v63, %v149
    %151 = vmatprep.mubr.bf16.mxu0 0
    %152 = vmatmul.mubr.bf16.gmra.mxu0 %v101
    %v153 = vpop.f32.mrf.mxu0
    %v154 = vadd.f32 %v59, %v153
    %v155 = vpop.f32.mrf.mxu0
    %v156 = vadd.f32 %v63, %v155
    %v157 = vpop.f32.mrf.mxu0
    %v158 = vadd.f32 %v59, %v157
    %v159 = vpop.f32.mrf.mxu0
    %v160 = vadd.f32 %v63, %v159
    %161 = vmatprep.mubr.bf16.mxu0 0
    %162 = vmatmul.mubr.bf16.gmra.mxu0 %v104
    %v163 = vpop.f32.mrf.mxu0
    %v164 = vadd.f32 %v59, %v163
    %v165 = vpop.f32.mrf.mxu0
    %v166 = vadd.f32 %v63, %v165
    %v167 = vpop.f32.mrf.mxu0
    %v168 = vadd.f32 %v59, %v167
    %v169 = vpop.f32.mrf.mxu0
    %v170 = vadd.f32 %v63, %v169
    %171 = vmatprep.mubr.bf16.mxu0 0
    %172 = vmatmul.mubr.bf16.gmra.mxu0 %v107
    %v173 = vpop.f32.mrf.mxu0
    %v174 = vadd.f32 %v59, %v173
    %v175 = vpop.f32.mrf.mxu0
    %v176 = vadd.f32 %v63, %v175
    %v177 = vpop.f32.mrf.mxu0
    %v178 = vadd.f32 %v59, %v177
    %v179 = vpop.f32.mrf.mxu0
    %v180 = vadd.f32 %v63, %v179
    %181 = vdwg.mxu0
    %182 = vmatprep.subr.bf16.mxu0 0
    %183 = vmatpush1.bf16.msra.mxu0 0
    %184 = vmatprep.subr.bf16.mxu0 0
    %185 = vmatpush1.bf16.msra.mxu0 0
    %186 = vmatprep.subr.bf16.mxu0 0
    %187 = vmatpush1.bf16.msra.mxu0 0
    %188 = vmatprep.subr.bf16.mxu0 0
    %189 = vmatpush1.bf16.msra.mxu0 0
    %190 = vmatprep.subr.bf16.mxu0 0
    %191 = vmatpush1.bf16.msra.mxu0 0
    %192 = vmatprep.subr.bf16.mxu0 0
    %193 = vmatpush1.bf16.msra.mxu0 0
    %194 = vmatprep.subr.bf16.mxu0 0
    %195 = vmatpush1.bf16.msra.mxu0 0
    %196 = vmatprep.subr.bf16.mxu0 %v91
    %197 = vmatpush1.bf16.msra.mxu0 %v90
    %198 = vmatprep.subr.bf16.mxu0 0
    %199 = vmatpush2.bf16.msra.mxu0 0
    %200 = vmatprep.subr.bf16.mxu0 0
    %201 = vmatpush2.bf16.msra.mxu0 0
    %202 = vmatprep.subr.bf16.mxu0 0
    %203 = vmatpush2.bf16.msra.mxu0 0
    %204 = vmatprep.subr.bf16.mxu0 0
    %205 = vmatpush2.bf16.msra.mxu0 0
    %206 = vmatprep.subr.bf16.mxu0 0
    %207 = vmatpush2.bf16.msra.mxu0 0
    %208 = vmatprep.subr.bf16.mxu0 0
    %209 = vmatpush2.bf16.msra.mxu0 0
    %210 = vmatprep.subr.bf16.mxu0 0
    %211 = vmatpush2.bf16.msra.mxu0 0
    %212 = vmatprep.subr.bf16.mxu0 0
    %213 = vmatpush2.bf16.msra.mxu0 0
    %214 = vmatprep.mubr.bf16.mxu0 0
    %215 = vmatmul.mubr.bf16.gmra.mxu0 %v98
    %v216 = vpop.f32.mrf.mxu0
    %v217 = vadd.f32 %v67, %v216
    %v218 = vpop.f32.mrf.mxu0
    %v219 = vadd.f32 %v71, %v218
    %v220 = vpop.f32.mrf.mxu0
    %v221 = vadd.f32 %v67, %v220
    %v222 = vpop.f32.mrf.mxu0
    %v223 = vadd.f32 %v71, %v222
    %224 = vmatprep.mubr.bf16.mxu0 0
    %225 = vmatmul.mubr.bf16.gmra.mxu0 %v101
    %v226 = vpop.f32.mrf.mxu0
    %v227 = vadd.f32 %v67, %v226
    %v228 = vpop.f32.mrf.mxu0
    %v229 = vadd.f32 %v71, %v228
    %v230 = vpop.f32.mrf.mxu0
    %v231 = vadd.f32 %v67, %v230
    %v232 = vpop.f32.mrf.mxu0
    %v233 = vadd.f32 %v71, %v232
    %234 = vmatprep.mubr.bf16.mxu0 0
    %235 = vmatmul.mubr.bf16.gmra.mxu0 %v104
    %v236 = vpop.f32.mrf.mxu0
    %v237 = vadd.f32 %v67, %v236
    %v238 = vpop.f32.mrf.mxu0
    %v239 = vadd.f32 %v71, %v238
    %v240 = vpop.f32.mrf.mxu0
    %v241 = vadd.f32 %v67, %v240
    %v242 = vpop.f32.mrf.mxu0
    %v243 = vadd.f32 %v71, %v242
    %244 = vmatprep.mubr.bf16.mxu0 0
    %245 = vmatmul.mubr.bf16.gmra.mxu0 %v107
    %v246 = vpop.f32.mrf.mxu0
    %v247 = vadd.f32 %v67, %v246
    %v248 = vpop.f32.mrf.mxu0
    %v249 = vadd.f32 %v71, %v248
    %v250 = vpop.f32.mrf.mxu0
    %v251 = vadd.f32 %v67, %v250
    %v252 = vpop.f32.mrf.mxu0
    %v253 = vadd.f32 %v71, %v252
    %254 = vdwg.mxu0
    %255 = vst [vmem:[#allocation2] sm:$0xff] %v144
    %256 = vst [vmem:[#allocation2 + $0x8] sm:$0xff] %v146
    %257 = vst [vmem:[#allocation2 + $0x10] sm:$0xff] %v217
    %258 = vst [vmem:[#allocation2 + $0x18] sm:$0xff] %v219
    %259 = vst [vmem:[#allocation2 + $0x20] sm:$0xff] %v148
    %260 = vst [vmem:[#allocation2 + $0x28] sm:$0xff] %v150
    %261 = vst [vmem:[#allocation2 + $0x30] sm:$0xff] %v221
    %262 = vst [vmem:[#allocation2 + $0x38] sm:$0xff] %v223
    %263 = vst [vmem:[#allocation2 + $0x40] sm:$0xff] %v154
    %264 = vst [vmem:[#allocation2 + $0x48] sm:$0xff] %v156
    %265 = vst [vmem:[#allocation2 + $0x50] sm:$0xff] %v227
    %266 = vst [vmem:[#allocation2 + $0x58] sm:$0xff] %v229
    %267 = vst [vmem:[#allocation2 + $0x60] sm:$0xff] %v158
    %268 = vst [vmem:[#allocation2 + $0x68] sm:$0xff] %v160
    %269 = vst [vmem:[#allocation2 + $0x70] sm:$0xff] %v231
    %270 = vst [vmem:[#allocation2 + $0x78] sm:$0xff] %v233
    %271 = vst [vmem:[#allocation2 + $0x80] sm:$0xff] %v164
    %272 = vst [vmem:[#allocation2 + $0x88] sm:$0xff] %v166
    %273 = vst [vmem:[#allocation2 + $0x90] sm:$0xff] %v237
    %274 = vst [vmem:[#allocation2 + $0x98] sm:$0xff] %v239
    %275 = vst [vmem:[#allocation2 + $0xa0] sm:$0xff] %v168
    %276 = vst [vmem:[#allocation2 + $0xa8] sm:$0xff] %v170
    %277 = vst [vmem:[#allocation2 + $0xb0] sm:$0xff] %v241
    %278 = vst [vmem:[#allocation2 + $0xb8] sm:$0xff] %v243
    %279 = vst [vmem:[#allocation2 + $0xc0] sm:$0xff] %v174
    %280 = vst [vmem:[#allocation2 + $0xc8] sm:$0xff] %v176
    %281 = vst [vmem:[#allocation2 + $0xd0] sm:$0xff] %v247
    %282 = vst [vmem:[#allocation2 + $0xd8] sm:$0xff] %v249
    %283 = vst [vmem:[#allocation2 + $0xe0] sm:$0xff] %v178
    %284 = vst [vmem:[#allocation2 + $0xe8] sm:$0xff] %v180
    %285 = vst [vmem:[#allocation2 + $0xf0] sm:$0xff] %v251
    %286 = vst [vmem:[#allocation2 + $0xf8] sm:$0xff] %v253
    %v287 = vld [vmem:[#allocation3] sm:$0xff]
    %v288 = vld [vmem:[#allocation3 + $0x8] sm:$0xff]
    %v289 = vld [vmem:[#allocation3 + $0x10] sm:$0xff]
    %v290 = vld [vmem:[#allocation3 + $0x18] sm:$0xff]
    %v291 = vld [vmem:[#allocation3 + $0x20] sm:$0xff]
    %v292 = vld [vmem:[#allocation3 + $0x28] sm:$0xff]
    %v293 = vld [vmem:[#allocation3 + $0x30] sm:$0xff]
    %v294 = vld [vmem:[#allocation3 + $0x38] sm:$0xff]
    %v295 = vld [vmem:[#allocation3 + $0x40] sm:$0xff]
    %v296 = vld [vmem:[#allocation3 + $0x48] sm:$0xff]
    %v297 = vld [vmem:[#allocation3 + $0x50] sm:$0xff]
    %v298 = vld [vmem:[#allocation3 + $0x58] sm:$0xff]
    %v299 = vld [vmem:[#allocation3 + $0x60] sm:$0xff]
    %v300 = vld [vmem:[#allocation3 + $0x68] sm:$0xff]
    %v301 = vld [vmem:[#allocation3 + $0x70] sm:$0xff]
    %v302 = vld [vmem:[#allocation3 + $0x78] sm:$0xff]
    %v303 = vld [vmem:[#allocation3 + $0x80] sm:$0xff]
    %v304 = vld [vmem:[#allocation3 + $0x88] sm:$0xff]
    %v305 = vld [vmem:[#allocation3 + $0x90] sm:$0xff]
    %v306 = vld [vmem:[#allocation3 + $0x98] sm:$0xff]
    %v307 = vld [vmem:[#allocation3 + $0xa0] sm:$0xff]
    %v308 = vld [vmem:[#allocation3 + $0xa8] sm:$0xff]
    %v309 = vld [vmem:[#allocation3 + $0xb0] sm:$0xff]
    %v310 = vld [vmem:[#allocation3 + $0xb8] sm:$0xff]
    %v311 = vld [vmem:[#allocation3 + $0xc0] sm:$0xff]
    %v312 = vld [vmem:[#allocation3 + $0xc8] sm:$0xff]
    %v313 = vld [vmem:[#allocation3 + $0xd0] sm:$0xff]
    %v314 = vld [vmem:[#allocation3 + $0xd8] sm:$0xff]
    %v315 = vld [vmem:[#allocation3 + $0xe0] sm:$0xff]
    %v316 = vld [vmem:[#allocation3 + $0xe8] sm:$0xff]
    %v317 = vld [vmem:[#allocation3 + $0xf0] sm:$0xff]
    %v318 = vld [vmem:[#allocation3 + $0xf8] sm:$0xff]
    %v319 = vld [vmem:[#allocation2] sm:$0xff]
    %v320 = vld [vmem:[#allocation2 + $0x8] sm:$0xff]
    %v321 = vld [vmem:[#allocation2 + $0x10] sm:$0xff]
    %v322 = vld [vmem:[#allocation2 + $0x18] sm:$0xff]
    %v355 = vunpack.c.l.b16 %v287
    %v356 = vunpack.c.h.b16 %v287
    %v357 = vunpack.c.l.b16 %v288
    %v358 = vunpack.c.h.b16 %v288
    %v359 = vunpack.c.l.b16 %v289
    %v360 = vunpack.c.h.b16 %v289
    %v361 = vunpack.c.l.b16 %v290
    %v362 = vunpack.c.h.b16 %v290
    %v363 = vunpack.c.l.b16 %v291
    %v364 = vunpack.c.h.b16 %v291
    %v365 = vunpack.c.l.b16 %v292
    %v366 = vunpack.c.h.b16 %v292
    %v367 = vunpack.c.l.b16 %v293
    %v368 = vunpack.c.h.b16 %v293
    %v369 = vunpack.c.l.b16 %v294
    %v370 = vunpack.c.h.b16 %v294
    %v371 = vunpack.c.l.b16 %v295
    %v372 = vunpack.c.h.b16 %v295
    %v373 = vunpack.c.l.b16 %v296
    %v374 = vunpack.c.h.b16 %v296
    %v375 = vunpack.c.l.b16 %v297
    %v376 = vunpack.c.h.b16 %v297
    %v377 = vunpack.c.l.b16 %v298
    %v378 = vunpack.c.h.b16 %v298
    %v379 = vunpack.c.l.b16 %v299
    %v380 = vunpack.c.h.b16 %v299
    %v381 = vunpack.c.l.b16 %v300
    %v382 = vunpack.c.h.b16 %v300
    %v383 = vunpack.c.l.b16 %v301
    %v384 = vunpack.c.h.b16 %v301
    %v385 = vunpack.c.l.b16 %v302
    %v386 = vunpack.c.h.b16 %v302
    %v387 = vunpack.c.l.b16 %v303
    %v388 = vunpack.c.h.b16 %v303
    %v389 = vunpack.c.l.b16 %v304
    %v390 = vunpack.c.h.b16 %v304
    %v391 = vunpack.c.l.b16 %v305
    %v392 = vunpack.c.h.b16 %v305
    %v393 = vunpack.c.l.b16 %v306
    %v394 = vunpack.c.h.b16 %v306
    %v395 = vunpack.c.l.b16 %v307
    %v396 = vunpack.c.h.b16 %v307
    %v397 = vunpack.c.l.b16 %v308
    %v398 = vunpack.c.h.b16 %v308
    %v399 = vunpack.c.l.b16 %v309
    %v400 = vunpack.c.h.b16 %v309
    %v401 = vunpack.c.l.b16 %v310
    %v402 = vunpack.c.h.b16 %v310
    %v403 = vunpack.c.l.b16 %v311
    %v404 = vunpack.c.h.b16 %v311
    %v405 = vunpack.c.l.b16 %v312
    %v406 = vunpack.c.h.b16 %v312
    %v407 = vunpack.c.l.b16 %v313
    %v408 = vunpack.c.h.b16 %v313
    %v409 = vunpack.c.l.b16 %v314
    %v410 = vunpack.c.h.b16 %v314
    %v411 = vunpack.c.l.b16 %v315
    %v412 = vunpack.c.h.b16 %v315
    %v413 = vunpack.c.l.b16 %v316
    %v414 = vunpack.c.h.b16 %v316
    %v415 = vunpack.c.l.b16 %v317
    %v416 = vunpack.c.h.b16 %v317
    %v417 = vunpack.c.l.b16 %v318
    %v418 = vunpack.c.h.b16 %v318
    %v419 = vpack.c.b16 %v359, %v355
    %v420 = vpack.c.b16 %v360, %v356
    %v421 = vpack.c.b16 %v361, %v357
    %v422 = vpack.c.b16 %v362, %v358
    %v423 = vpack.c.b16 %v367, %v363
    %v424 = vpack.c.b16 %v368, %v364
    %v425 = vpack.c.b16 %v369, %v365
    %v426 = vpack.c.b16 %v370, %v366
    %v427 = vpack.c.b16 %v375, %v371
    %v428 = vpack.c.b16 %v376, %v372
    %v429 = vpack.c.b16 %v377, %v373
    %v430 = vpack.c.b16 %v378, %v374
    %v431 = vpack.c.b16 %v383, %v379
    %v432 = vpack.c.b16 %v384, %v380
    %v433 = vpack.c.b16 %v385, %v381
    %v434 = vpack.c.b16 %v386, %v382
    %v435 = vpack.c.b16 %v391, %v387
    %v436 = vpack.c.b16 %v392, %v388
    %v437 = vpack.c.b16 %v393, %v389
    %v438 = vpack.c.b16 %v394, %v390
    %v439 = vpack.c.b16 %v399, %v395
    %v440 = vpack.c.b16 %v400, %v396
    %v441 = vpack.c.b16 %v401, %v397
    %v442 = vpack.c.b16 %v402, %v398
    %v443 = vpack.c.b16 %v407, %v403
    %v444 = vpack.c.b16 %v408, %v404
    %v445 = vpack.c.b16 %v409, %v405
    %v446 = vpack.c.b16 %v410, %v406
    %v447 = vpack.c.b16 %v415, %v411
    %v448 = vpack.c.b16 %v416, %v412
    %v449 = vpack.c.b16 %v417, %v413
    %v450 = vpack.c.b16 %v418, %v414
    %483 = vmatprep.subr.bf16.mxu0 %v448
    %484 = vmatpush1.bf16.msra.mxu0 %v447
    %485 = vmatprep.subr.bf16.mxu0 %v444
    %486 = vmatpush1.bf16.msra.mxu0 %v443
    %487 = vmatprep.subr.bf16.mxu0 %v440
    %488 = vmatpush1.bf16.msra.mxu0 %v439
    %489 = vmatprep.subr.bf16.mxu0 %v436
    %490 = vmatpush1.bf16.msra.mxu0 %v435
    %491 = vmatprep.subr.bf16.mxu0 %v432
    %492 = vmatpush1.bf16.msra.mxu0 %v431
    %493 = vmatprep.subr.bf16.mxu0 %v428
    %494 = vmatpush1.bf16.msra.mxu0 %v427
    %495 = vmatprep.subr.bf16.mxu0 %v424
    %496 = vmatpush1.bf16.msra.mxu0 %v423
    %497 = vmatprep.subr.bf16.mxu0 %v420
    %498 = vmatpush1.bf16.msra.mxu0 %v419
    %499 = vmatprep.subr.bf16.mxu0 0
    %500 = vmatpush2.bf16.msra.mxu0 0
    %501 = vmatprep.subr.bf16.mxu0 0
    %502 = vmatpush2.bf16.msra.mxu0 0
    %503 = vmatprep.subr.bf16.mxu0 0
    %504 = vmatpush2.bf16.msra.mxu0 0
    %505 = vmatprep.subr.bf16.mxu0 0
    %506 = vmatpush2.bf16.msra.mxu0 0
    %507 = vmatprep.subr.bf16.mxu0 0
    %508 = vmatpush2.bf16.msra.mxu0 0
    %509 = vmatprep.subr.bf16.mxu0 0
    %510 = vmatpush2.bf16.msra.mxu0 0
    %511 = vmatprep.subr.bf16.mxu0 0
    %512 = vmatpush2.bf16.msra.mxu0 0
    %513 = vmatprep.subr.bf16.mxu0 0
    %514 = vmatpush2.bf16.msra.mxu0 0
    %515 = vmatprep.mubr.bf16.mxu0 0
    %516 = vmatmul.mubr.bf16.gmra.mxu0 0
    %v517 = vpop.f32.mrf.mxu0
    %v518 = vadd.f32 0.0, %v517
    %v519 = vpop.f32.mrf.mxu0
    %v520 = vadd.f32 0.0, %v519
    %v521 = vpop.f32.mrf.mxu0
    %v522 = vpop.f32.mrf.mxu0
    %523 = vdwg.mxu0
    %524 = vmatprep.subr.bf16.mxu0 %v450
    %525 = vmatpush1.bf16.msra.mxu0 %v449
    %526 = vmatprep.subr.bf16.mxu0 %v446
    %527 = vmatpush1.bf16.msra.mxu0 %v445
    %528 = vmatprep.subr.bf16.mxu0 %v442
    %529 = vmatpush1.bf16.msra.mxu0 %v441
    %530 = vmatprep.subr.bf16.mxu0 %v438
    %531 = vmatpush1.bf16.msra.mxu0 %v437
    %532 = vmatprep.subr.bf16.mxu0 %v434
    %533 = vmatpush1.bf16.msra.mxu0 %v433
    %534 = vmatprep.subr.bf16.mxu0 %v430
    %535 = vmatpush1.bf16.msra.mxu0 %v429
    %536 = vmatprep.subr.bf16.mxu0 %v426
    %537 = vmatpush1.bf16.msra.mxu0 %v425
    %538 = vmatprep.subr.bf16.mxu0 %v422
    %539 = vmatpush1.bf16.msra.mxu0 %v421
    %540 = vmatprep.subr.bf16.mxu0 0
    %541 = vmatpush2.bf16.msra.mxu0 0
    %542 = vmatprep.subr.bf16.mxu0 0
    %543 = vmatpush2.bf16.msra.mxu0 0
    %544 = vmatprep.subr.bf16.mxu0 0
    %545 = vmatpush2.bf16.msra.mxu0 0
    %546 = vmatprep.subr.bf16.mxu0 0
    %547 = vmatpush2.bf16.msra.mxu0 0
    %548 = vmatprep.subr.bf16.mxu0 0
    %549 = vmatpush2.bf16.msra.mxu0 0
    %550 = vmatprep.subr.bf16.mxu0 0
    %551 = vmatpush2.bf16.msra.mxu0 0
    %552 = vmatprep.subr.bf16.mxu0 0
    %553 = vmatpush2.bf16.msra.mxu0 0
    %554 = vmatprep.subr.bf16.mxu0 0
    %555 = vmatpush2.bf16.msra.mxu0 0
    %556 = vmatprep.mubr.bf16.mxu0 0
    %557 = vmatmul.mubr.bf16.gmra.mxu0 0
    %v558 = vpop.f32.mrf.mxu0
    %v559 = vadd.f32 0.0, %v558
    %v560 = vpop.f32.mrf.mxu0
    %v561 = vadd.f32 0.0, %v560
    %v562 = vpop.f32.mrf.mxu0
    %v563 = vpop.f32.mrf.mxu0
    %564 = vdwg.mxu0
    %v565 = vadd.f32 %v319, %v518
    %v566 = vadd.f32 %v320, %v520
    %v567 = vadd.f32 %v321, %v559
    %v568 = vadd.f32 %v322, %v561
    %v569 = vxor.u32 %v565, 2147483648
    %v570 = vmul.f32 %v569, 1.442695
    %v571 = vpow.pop %v570
    %v572 = vadd.f32 %v571, 1.0
    %v573 = vrcp.pop %v572
    %v574 = vmul.f32 1.0, %v573
    %v575 = vxor.u32 %v566, 2147483648
    %v576 = vmul.f32 %v575, 1.442695
    %v577 = vpow.pop %v576
    %v578 = vadd.f32 %v577, 1.0
    %v579 = vrcp.pop %v578
    %v580 = vmul.f32 1.0, %v579
    %v581 = vtanh.pop %v567
    %v582 = vxor.u32 %v568, 2147483648
    %v583 = vmul.f32 %v582, 1.442695
    %v584 = vpow.pop %v583
    %v585 = vadd.f32 %v584, 1.0
    %v586 = vrcp.pop %v585
    %v587 = vmul.f32 1.0, %v586
    %v588 = vmul.f32 %v580, 0.0
    %v589 = vmul.f32 %v574, %v581
    %v590 = vadd.f32 %v588, %v589
    %v591 = vtanh.pop %v590
    %v592 = vmul.f32 %v587, %v591
    %s593 = scalar_lea.vmem [#allocation2], 32
    %v594 = vld [vmem:[%s593] sm:$0xff]
    %v595 = vld [vmem:[%s593 + $0x8] sm:$0xff]
    %v596 = vld [vmem:[%s593 + $0x10] sm:$0xff]
    %v597 = vld [vmem:[%s593 + $0x18] sm:$0xff]
    %v598 = vpack.c.bf16 %v592, %v592
    %599 = vmatprep.subr.bf16.mxu0 %v448
    %600 = vmatpush1.bf16.msra.mxu0 %v447
    %601 = vmatprep.subr.bf16.mxu0 %v444
    %602 = vmatpush1.bf16.msra.mxu0 %v443
    %603 = vmatprep.subr.bf16.mxu0 %v440
    %604 = vmatpush1.bf16.msra.mxu0 %v439
    %605 = vmatprep.subr.bf16.mxu0 %v436
    %606 = vmatpush1.bf16.msra.mxu0 %v435
    %607 = vmatprep.subr.bf16.mxu0 %v432
    %608 = vmatpush1.bf16.msra.mxu0 %v431
    %609 = vmatprep.subr.bf16.mxu0 %v428
    %610 = vmatpush1.bf16.msra.mxu0 %v427
    %611 = vmatprep.subr.bf16.mxu0 %v424
    %612 = vmatpush1.bf16.msra.mxu0 %v423
    %613 = vmatprep.subr.bf16.mxu0 %v420
    %614 = vmatpush1.bf16.msra.mxu0 %v419
    %615 = vmatprep.subr.bf16.mxu0 0
    %616 = vmatpush2.bf16.msra.mxu0 0
    %617 = vmatprep.subr.bf16.mxu0 0
    %618 = vmatpush2.bf16.msra.mxu0 0
    %619 = vmatprep.subr.bf16.mxu0 0
    %620 = vmatpush2.bf16.msra.mxu0 0
    %621 = vmatprep.subr.bf16.mxu0 0
    %622 = vmatpush2.bf16.msra.mxu0 0
    %623 = vmatprep.subr.bf16.mxu0 0
    %624 = vmatpush2.bf16.msra.mxu0 0
    %625 = vmatprep.subr.bf16.mxu0 0
    %626 = vmatpush2.bf16.msra.mxu0 0
    %627 = vmatprep.subr.bf16.mxu0 0
    %628 = vmatpush2.bf16.msra.mxu0 0
    %629 = vmatprep.subr.bf16.mxu0 0
    %630 = vmatpush2.bf16.msra.mxu0 0
    %631 = vmatprep.mubr.bf16.mxu0 0
    %632 = vmatmul.mubr.bf16.gmra.mxu0 %v598
    %v633 = vpop.f32.mrf.mxu0
    %v634 = vadd.f32 0.0, %v633
    %v635 = vpop.f32.mrf.mxu0
    %v636 = vadd.f32 0.0, %v635
    %v637 = vpop.f32.mrf.mxu0
    %v638 = vpop.f32.mrf.mxu0
    %639 = vdwg.mxu0
    %640 = vmatprep.subr.bf16.mxu0 %v450
    %641 = vmatpush1.bf16.msra.mxu0 %v449
    %642 = vmatprep.subr.bf16.mxu0 %v446
    %643 = vmatpush1.bf16.msra.mxu0 %v445
    %644 = vmatprep.subr.bf16.mxu0 %v442
    %645 = vmatpush1.bf16.msra.mxu0 %v441
    %646 = vmatprep.subr.bf16.mxu0 %v438
    %647 = vmatpush1.bf16.msra.mxu0 %v437
    %648 = vmatprep.subr.bf16.mxu0 %v434
    %649 = vmatpush1.bf16.msra.mxu0 %v433
    %650 = vmatprep.subr.bf16.mxu0 %v430
    %651 = vmatpush1.bf16.msra.mxu0 %v429
    %652 = vmatprep.subr.bf16.mxu0 %v426
    %653 = vmatpush1.bf16.msra.mxu0 %v425
    %654 = vmatprep.subr.bf16.mxu0 %v422
    %655 = vmatpush1.bf16.msra.mxu0 %v421
    %656 = vmatprep.subr.bf16.mxu0 0
    %657 = vmatpush2.bf16.msra.mxu0 0
    %658 = vmatprep.subr.bf16.mxu0 0
    %659 = vmatpush2.bf16.msra.mxu0 0
    %660 = vmatprep.subr.bf16.mxu0 0
    %661 = vmatpush2.bf16.msra.mxu0 0
    %662 = vmatprep.subr.bf16.mxu0 0
    %663 = vmatpush2.bf16.msra.mxu0 0
    %664 = vmatprep.subr.bf16.mxu0 0
    %665 = vmatpush2.bf16.msra.mxu0 0
    %666 = vmatprep.subr.bf16.mxu0 0
    %667 = vmatpush2.bf16.msra.mxu0 0
    %668 = vmatprep.subr.bf16.mxu0 0
    %669 = vmatpush2.bf16.msra.mxu0 0
    %670 = vmatprep.subr.bf16.mxu0 0
    %671 = vmatpush2.bf16.msra.mxu0 0
    %672 = vmatprep.mubr.bf16.mxu0 0
    %673 = vmatmul.mubr.bf16.gmra.mxu0 %v598
    %v674 = vpop.f32.mrf.mxu0
    %v675 = vadd.f32 0.0, %v674
    %v676 = vpop.f32.mrf.mxu0
    %v677 = vadd.f32 0.0, %v676
    %v678 = vpop.f32.mrf.mxu0
    %v679 = vpop.f32.mrf.mxu0
    %680 = vdwg.mxu0
    %v681 = vadd.f32 %v594, %v634
    %v682 = vadd.f32 %v595, %v636
    %v683 = vadd.f32 %v596, %v675
    %v684 = vadd.f32 %v597, %v677
    %v685 = vxor.u32 %v681, 2147483648
    %v686 = vmul.f32 %v685, 1.442695
    %v687 = vpow.pop %v686
    %v688 = vadd.f32 %v687, 1.0
    %v689 = vrcp.pop %v688
    %v690 = vmul.f32 1.0, %v689
    %v691 = vxor.u32 %v682, 2147483648
    %v692 = vmul.f32 %v691, 1.442695
    %v693 = vpow.pop %v692
    %v694 = vadd.f32 %v693, 1.0
    %v695 = vrcp.pop %v694
    %v696 = vmul.f32 1.0, %v695
    %v697 = vtanh.pop %v683
    %v698 = vxor.u32 %v684, 2147483648
    %v699 = vmul.f32 %v698, 1.442695
    %v700 = vpow.pop %v699
    %v701 = vadd.f32 %v700, 1.0
    %v702 = vrcp.pop %v701
    %v703 = vmul.f32 1.0, %v702
    %v704 = vmul.f32 %v696, %v590
    %v705 = vmul.f32 %v690, %v697
    %v706 = vadd.f32 %v704, %v705
    %v707 = vtanh.pop %v706
    %v708 = vmul.f32 %v703, %v707
    %s709 = scalar_lea.vmem [#allocation2], 64
    %v710 = vld [vmem:[%s709] sm:$0xff]
    %v711 = vld [vmem:[%s709 + $0x8] sm:$0xff]
    %v712 = vld [vmem:[%s709 + $0x10] sm:$0xff]
    %v713 = vld [vmem:[%s709 + $0x18] sm:$0xff]
    %v714 = vpack.c.bf16 %v708, %v708
    %715 = vmatprep.subr.bf16.mxu0 %v448
    %716 = vmatpush1.bf16.msra.mxu0 %v447
    %717 = vmatprep.subr.bf16.mxu0 %v444
    %718 = vmatpush1.bf16.msra.mxu0 %v443
    %719 = vmatprep.subr.bf16.mxu0 %v440
    %720 = vmatpush1.bf16.msra.mxu0 %v439
    %721 = vmatprep.subr.bf16.mxu0 %v436
    %722 = vmatpush1.bf16.msra.mxu0 %v435
    %723 = vmatprep.subr.bf16.mxu0 %v432
    %724 = vmatpush1.bf16.msra.mxu0 %v431
    %725 = vmatprep.subr.bf16.mxu0 %v428
    %726 = vmatpush1.bf16.msra.mxu0 %v427
    %727 = vmatprep.subr.bf16.mxu0 %v424
    %728 = vmatpush1.bf16.msra.mxu0 %v423
    %729 = vmatprep.subr.bf16.mxu0 %v420
    %730 = vmatpush1.bf16.msra.mxu0 %v419
    %731 = vmatprep.subr.bf16.mxu0 0
    %732 = vmatpush2.bf16.msra.mxu0 0
    %733 = vmatprep.subr.bf16.mxu0 0
    %734 = vmatpush2.bf16.msra.mxu0 0
    %735 = vmatprep.subr.bf16.mxu0 0
    %736 = vmatpush2.bf16.msra.mxu0 0
    %737 = vmatprep.subr.bf16.mxu0 0
    %738 = vmatpush2.bf16.msra.mxu0 0
    %739 = vmatprep.subr.bf16.mxu0 0
    %740 = vmatpush2.bf16.msra.mxu0 0
    %741 = vmatprep.subr.bf16.mxu0 0
    %742 = vmatpush2.bf16.msra.mxu0 0
    %743 = vmatprep.subr.bf16.mxu0 0
    %744 = vmatpush2.bf16.msra.mxu0 0
    %745 = vmatprep.subr.bf16.mxu0 0
    %746 = vmatpush2.bf16.msra.mxu0 0
    %747 = vmatprep.mubr.bf16.mxu0 0
    %748 = vmatmul.mubr.bf16.gmra.mxu0 %v714
    %v749 = vpop.f32.mrf.mxu0
    %v750 = vadd.f32 0.0, %v749
    %v751 = vpop.f32.mrf.mxu0
    %v752 = vadd.f32 0.0, %v751
    %v753 = vpop.f32.mrf.mxu0
    %v754 = vpop.f32.mrf.mxu0
    %755 = vdwg.mxu0
    %756 = vmatprep.subr.bf16.mxu0 %v450
    %757 = vmatpush1.bf16.msra.mxu0 %v449
    %758 = vmatprep.subr.bf16.mxu0 %v446
    %759 = vmatpush1.bf16.msra.mxu0 %v445
    %760 = vmatprep.subr.bf16.mxu0 %v442
    %761 = vmatpush1.bf16.msra.mxu0 %v441
    %762 = vmatprep.subr.bf16.mxu0 %v438
    %763 = vmatpush1.bf16.msra.mxu0 %v437
    %764 = vmatprep.subr.bf16.mxu0 %v434
    %765 = vmatpush1.bf16.msra.mxu0 %v433
    %766 = vmatprep.subr.bf16.mxu0 %v430
    %767 = vmatpush1.bf16.msra.mxu0 %v429
    %768 = vmatprep.subr.bf16.mxu0 %v426
    %769 = vmatpush1.bf16.msra.mxu0 %v425
    %770 = vmatprep.subr.bf16.mxu0 %v422
    %771 = vmatpush1.bf16.msra.mxu0 %v421
    %772 = vmatprep.subr.bf16.mxu0 0
    %773 = vmatpush2.bf16.msra.mxu0 0
    %774 = vmatprep.subr.bf16.mxu0 0
    %775 = vmatpush2.bf16.msra.mxu0 0
    %776 = vmatprep.subr.bf16.mxu0 0
    %777 = vmatpush2.bf16.msra.mxu0 0
    %778 = vmatprep.subr.bf16.mxu0 0
    %779 = vmatpush2.bf16.msra.mxu0 0
    %780 = vmatprep.subr.bf16.mxu0 0
    %781 = vmatpush2.bf16.msra.mxu0 0
    %782 = vmatprep.subr.bf16.mxu0 0
    %783 = vmatpush2.bf16.msra.mxu0 0
    %784 = vmatprep.subr.bf16.mxu0 0
    %785 = vmatpush2.bf16.msra.mxu0 0
    %786 = vmatprep.subr.bf16.mxu0 0
    %787 = vmatpush2.bf16.msra.mxu0 0
    %788 = vmatprep.mubr.bf16.mxu0 0
    %789 = vmatmul.mubr.bf16.gmra.mxu0 %v714
    %v790 = vpop.f32.mrf.mxu0
    %v791 = vadd.f32 0.0, %v790
    %v792 = vpop.f32.mrf.mxu0
    %v793 = vadd.f32 0.0, %v792
    %v794 = vpop.f32.mrf.mxu0
    %v795 = vpop.f32.mrf.mxu0
    %796 = vdwg.mxu0
    %v797 = vadd.f32 %v710, %v750
    %v798 = vadd.f32 %v711, %v752
    %v799 = vadd.f32 %v712, %v791
    %v800 = vadd.f32 %v713, %v793
    %v801 = vxor.u32 %v797, 2147483648
    %v802 = vmul.f32 %v801, 1.442695
    %v803 = vpow.pop %v802
    %v804 = vadd.f32 %v803, 1.0
    %v805 = vrcp.pop %v804
    %v806 = vmul.f32 1.0, %v805
    %v807 = vxor.u32 %v798, 2147483648
    %v808 = vmul.f32 %v807, 1.442695
    %v809 = vpow.pop %v808
    %v810 = vadd.f32 %v809, 1.0
    %v811 = vrcp.pop %v810
    %v812 = vmul.f32 1.0, %v811
    %v813 = vtanh.pop %v799
    %v814 = vxor.u32 %v800, 2147483648
    %v815 = vmul.f32 %v814, 1.442695
    %v816 = vpow.pop %v815
    %v817 = vadd.f32 %v816, 1.0
    %v818 = vrcp.pop %v817
    %v819 = vmul.f32 1.0, %v818
    %v820 = vmul.f32 %v812, %v706
    %v821 = vmul.f32 %v806, %v813
    %v822 = vadd.f32 %v820, %v821
    %v823 = vtanh.pop %v822
    %v824 = vmul.f32 %v819, %v823
    %s825 = scalar_lea.vmem [#allocation2], 96
    %v826 = vld [vmem:[%s825] sm:$0xff]
    %v827 = vld [vmem:[%s825 + $0x8] sm:$0xff]
    %v828 = vld [vmem:[%s825 + $0x10] sm:$0xff]
    %v829 = vld [vmem:[%s825 + $0x18] sm:$0xff]
    %v830 = vpack.c.bf16 %v824, %v824
    %831 = vmatprep.subr.bf16.mxu0 %v448
    %832 = vmatpush1.bf16.msra.mxu0 %v447
    %833 = vmatprep.subr.bf16.mxu0 %v444
    %834 = vmatpush1.bf16.msra.mxu0 %v443
    %835 = vmatprep.subr.bf16.mxu0 %v440
    %836 = vmatpush1.bf16.msra.mxu0 %v439
    %837 = vmatprep.subr.bf16.mxu0 %v436
    %838 = vmatpush1.bf16.msra.mxu0 %v435
    %839 = vmatprep.subr.bf16.mxu0 %v432
    %840 = vmatpush1.bf16.msra.mxu0 %v431
    %841 = vmatprep.subr.bf16.mxu0 %v428
    %842 = vmatpush1.bf16.msra.mxu0 %v427
    %843 = vmatprep.subr.bf16.mxu0 %v424
    %844 = vmatpush1.bf16.msra.mxu0 %v423
    %845 = vmatprep.subr.bf16.mxu0 %v420
    %846 = vmatpush1.bf16.msra.mxu0 %v419
    %847 = vmatprep.subr.bf16.mxu0 0
    %848 = vmatpush2.bf16.msra.mxu0 0
    %849 = vmatprep.subr.bf16.mxu0 0
    %850 = vmatpush2.bf16.msra.mxu0 0
    %851 = vmatprep.subr.bf16.mxu0 0
    %852 = vmatpush2.bf16.msra.mxu0 0
    %853 = vmatprep.subr.bf16.mxu0 0
    %854 = vmatpush2.bf16.msra.mxu0 0
    %855 = vmatprep.subr.bf16.mxu0 0
    %856 = vmatpush2.bf16.msra.mxu0 0
    %857 = vmatprep.subr.bf16.mxu0 0
    %858 = vmatpush2.bf16.msra.mxu0 0
    %859 = vmatprep.subr.bf16.mxu0 0
    %860 = vmatpush2.bf16.msra.mxu0 0
    %861 = vmatprep.subr.bf16.mxu0 0
    %862 = vmatpush2.bf16.msra.mxu0 0
    %863 = vmatprep.mubr.bf16.mxu0 0
    %864 = vmatmul.mubr.bf16.gmra.mxu0 %v830
    %v865 = vpop.f32.mrf.mxu0
    %v866 = vadd.f32 0.0, %v865
    %v867 = vpop.f32.mrf.mxu0
    %v868 = vadd.f32 0.0, %v867
    %v869 = vpop.f32.mrf.mxu0
    %v870 = vpop.f32.mrf.mxu0
    %871 = vdwg.mxu0
    %872 = vmatprep.subr.bf16.mxu0 %v450
    %873 = vmatpush1.bf16.msra.mxu0 %v449
    %874 = vmatprep.subr.bf16.mxu0 %v446
    %875 = vmatpush1.bf16.msra.mxu0 %v445
    %876 = vmatprep.subr.bf16.mxu0 %v442
    %877 = vmatpush1.bf16.msra.mxu0 %v441
    %878 = vmatprep.subr.bf16.mxu0 %v438
    %879 = vmatpush1.bf16.msra.mxu0 %v437
    %880 = vmatprep.subr.bf16.mxu0 %v434
    %881 = vmatpush1.bf16.msra.mxu0 %v433
    %882 = vmatprep.subr.bf16.mxu0 %v430
    %883 = vmatpush1.bf16.msra.mxu0 %v429
    %884 = vmatprep.subr.bf16.mxu0 %v426
    %885 = vmatpush1.bf16.msra.mxu0 %v425
    %886 = vmatprep.subr.bf16.mxu0 %v422
    %887 = vmatpush1.bf16.msra.mxu0 %v421
    %888 = vmatprep.subr.bf16.mxu0 0
    %889 = vmatpush2.bf16.msra.mxu0 0
    %890 = vmatprep.subr.bf16.mxu0 0
    %891 = vmatpush2.bf16.msra.mxu0 0
    %892 = vmatprep.subr.bf16.mxu0 0
    %893 = vmatpush2.bf16.msra.mxu0 0
    %894 = vmatprep.subr.bf16.mxu0 0
    %895 = vmatpush2.bf16.msra.mxu0 0
    %896 = vmatprep.subr.bf16.mxu0 0
    %897 = vmatpush2.bf16.msra.mxu0 0
    %898 = vmatprep.subr.bf16.mxu0 0
    %899 = vmatpush2.bf16.msra.mxu0 0
    %900 = vmatprep.subr.bf16.mxu0 0
    %901 = vmatpush2.bf16.msra.mxu0 0
    %902 = vmatprep.subr.bf16.mxu0 0
    %903 = vmatpush2.bf16.msra.mxu0 0
    %904 = vmatprep.mubr.bf16.mxu0 0
    %905 = vmatmul.mubr.bf16.gmra.mxu0 %v830
    %v906 = vpop.f32.mrf.mxu0
    %v907 = vadd.f32 0.0, %v906
    %v908 = vpop.f32.mrf.mxu0
    %v909 = vadd.f32 0.0, %v908
    %v910 = vpop.f32.mrf.mxu0
    %v911 = vpop.f32.mrf.mxu0
    %912 = vdwg.mxu0
    %v913 = vadd.f32 %v826, %v866
    %v914 = vadd.f32 %v827, %v868
    %v915 = vadd.f32 %v828, %v907
    %v916 = vadd.f32 %v829, %v909
    %v917 = vxor.u32 %v913, 2147483648
    %v918 = vmul.f32 %v917, 1.442695
    %v919 = vpow.pop %v918
    %v920 = vadd.f32 %v919, 1.0
    %v921 = vrcp.pop %v920
    %v922 = vmul.f32 1.0, %v921
    %v923 = vxor.u32 %v914, 2147483648
    %v924 = vmul.f32 %v923, 1.442695
    %v925 = vpow.pop %v924
    %v926 = vadd.f32 %v925, 1.0
    %v927 = vrcp.pop %v926
    %v928 = vmul.f32 1.0, %v927
    %v929 = vtanh.pop %v915
    %v930 = vxor.u32 %v916, 2147483648
    %v931 = vmul.f32 %v930, 1.442695
    %v932 = vpow.pop %v931
    %v933 = vadd.f32 %v932, 1.0
    %v934 = vrcp.pop %v933
    %v935 = vmul.f32 1.0, %v934
    %v936 = vmul.f32 %v928, %v822
    %v937 = vmul.f32 %v922, %v929
    %v938 = vadd.f32 %v936, %v937
    %v939 = vtanh.pop %v938
    %v940 = vmul.f32 %v935, %v939
    %s941 = scalar_lea.vmem [#allocation2], 128
    %v942 = vld [vmem:[%s941] sm:$0xff]
    %v943 = vld [vmem:[%s941 + $0x8] sm:$0xff]
    %v944 = vld [vmem:[%s941 + $0x10] sm:$0xff]
    %v945 = vld [vmem:[%s941 + $0x18] sm:$0xff]
    %v946 = vpack.c.bf16 %v940, %v940
    %947 = vmatprep.subr.bf16.mxu0 %v448
    %948 = vmatpush1.bf16.msra.mxu0 %v447
    %949 = vmatprep.subr.bf16.mxu0 %v444
    %950 = vmatpush1.bf16.msra.mxu0 %v443
    %951 = vmatprep.subr.bf16.mxu0 %v440
    %952 = vmatpush1.bf16.msra.mxu0 %v439
    %953 = vmatprep.subr.bf16.mxu0 %v436
    %954 = vmatpush1.bf16.msra.mxu0 %v435
    %955 = vmatprep.subr.bf16.mxu0 %v432
    %956 = vmatpush1.bf16.msra.mxu0 %v431
    %957 = vmatprep.subr.bf16.mxu0 %v428
    %958 = vmatpush1.bf16.msra.mxu0 %v427
    %959 = vmatprep.subr.bf16.mxu0 %v424
    %960 = vmatpush1.bf16.msra.mxu0 %v423
    %961 = vmatprep.subr.bf16.mxu0 %v420
    %962 = vmatpush1.bf16.msra.mxu0 %v419
    %963 = vmatprep.subr.bf16.mxu0 0
    %964 = vmatpush2.bf16.msra.mxu0 0
    %965 = vmatprep.subr.bf16.mxu0 0
    %966 = vmatpush2.bf16.msra.mxu0 0
    %967 = vmatprep.subr.bf16.mxu0 0
    %968 = vmatpush2.bf16.msra.mxu0 0
    %969 = vmatprep.subr.bf16.mxu0 0
    %970 = vmatpush2.bf16.msra.mxu0 0
    %971 = vmatprep.subr.bf16.mxu0 0
    %972 = vmatpush2.bf16.msra.mxu0 0
    %973 = vmatprep.subr.bf16.mxu0 0
    %974 = vmatpush2.bf16.msra.mxu0 0
    %975 = vmatprep.subr.bf16.mxu0 0
    %976 = vmatpush2.bf16.msra.mxu0 0
    %977 = vmatprep.subr.bf16.mxu0 0
    %978 = vmatpush2.bf16.msra.mxu0 0
    %979 = vmatprep.mubr.bf16.mxu0 0
    %980 = vmatmul.mubr.bf16.gmra.mxu0 %v946
    %v981 = vpop.f32.mrf.mxu0
    %v982 = vadd.f32 0.0, %v981
    %v983 = vpop.f32.mrf.mxu0
    %v984 = vadd.f32 0.0, %v983
    %v985 = vpop.f32.mrf.mxu0
    %v986 = vpop.f32.mrf.mxu0
    %987 = vdwg.mxu0
    %988 = vmatprep.subr.bf16.mxu0 %v450
    %989 = vmatpush1.bf16.msra.mxu0 %v449
    %990 = vmatprep.subr.bf16.mxu0 %v446
    %991 = vmatpush1.bf16.msra.mxu0 %v445
    %992 = vmatprep.subr.bf16.mxu0 %v442
    %993 = vmatpush1.bf16.msra.mxu0 %v441
    %994 = vmatprep.subr.bf16.mxu0 %v438
    %995 = vmatpush1.bf16.msra.mxu0 %v437
    %996 = vmatprep.subr.bf16.mxu0 %v434
    %997 = vmatpush1.bf16.msra.mxu0 %v433
    %998 = vmatprep.subr.bf16.mxu0 %v430
    %999 = vmatpush1.bf16.msra.mxu0 %v429
    %1000 = vmatprep.subr.bf16.mxu0 %v426
    %1001 = vmatpush1.bf16.msra.mxu0 %v425
    %1002 = vmatprep.subr.bf16.mxu0 %v422
    %1003 = vmatpush1.bf16.msra.mxu0 %v421
    %1004 = vmatprep.subr.bf16.mxu0 0
    %1005 = vmatpush2.bf16.msra.mxu0 0
    %1006 = vmatprep.subr.bf16.mxu0 0
    %1007 = vmatpush2.bf16.msra.mxu0 0
    %1008 = vmatprep.subr.bf16.mxu0 0
    %1009 = vmatpush2.bf16.msra.mxu0 0
    %1010 = vmatprep.subr.bf16.mxu0 0
    %1011 = vmatpush2.bf16.msra.mxu0 0
    %1012 = vmatprep.subr.bf16.mxu0 0
    %1013 = vmatpush2.bf16.msra.mxu0 0
    %1014 = vmatprep.subr.bf16.mxu0 0
    %1015 = vmatpush2.bf16.msra.mxu0 0
    %1016 = vmatprep.subr.bf16.mxu0 0
    %1017 = vmatpush2.bf16.msra.mxu0 0
    %1018 = vmatprep.subr.bf16.mxu0 0
    %1019 = vmatpush2.bf16.msra.mxu0 0
    %1020 = vmatprep.mubr.bf16.mxu0 0
    %1021 = vmatmul.mubr.bf16.gmra.mxu0 %v946
    %v1022 = vpop.f32.mrf.mxu0
    %v1023 = vadd.f32 0.0, %v1022
    %v1024 = vpop.f32.mrf.mxu0
    %v1025 = vadd.f32 0.0, %v1024
    %v1026 = vpop.f32.mrf.mxu0
    %v1027 = vpop.f32.mrf.mxu0
    %1028 = vdwg.mxu0
    %v1029 = vadd.f32 %v942, %v982
    %v1030 = vadd.f32 %v943, %v984
    %v1031 = vadd.f32 %v944, %v1023
    %v1032 = vadd.f32 %v945, %v1025
    %v1033 = vxor.u32 %v1029, 2147483648
    %v1034 = vmul.f32 %v1033, 1.442695
    %v1035 = vpow.pop %v1034
    %v1036 = vadd.f32 %v1035, 1.0
    %v1037 = vrcp.pop %v1036
    %v1038 = vmul.f32 1.0, %v1037
    %v1039 = vxor.u32 %v1030, 2147483648
    %v1040 = vmul.f32 %v1039, 1.442695
    %v1041 = vpow.pop %v1040
    %v1042 = vadd.f32 %v1041, 1.0
    %v1043 = vrcp.pop %v1042
    %v1044 = vmul.f32 1.0, %v1043
    %v1045 = vtanh.pop %v1031
    %v1046 = vxor.u32 %v1032, 2147483648
    %v1047 = vmul.f32 %v1046, 1.442695
    %v1048 = vpow.pop %v1047
    %v1049 = vadd.f32 %v1048, 1.0
    %v1050 = vrcp.pop %v1049
    %v1051 = vmul.f32 1.0, %v1050
    %v1052 = vmul.f32 %v1044, %v938
    %v1053 = vmul.f32 %v1038, %v1045
    %v1054 = vadd.f32 %v1052, %v1053
    %v1055 = vtanh.pop %v1054
    %v1056 = vmul.f32 %v1051, %v1055
    %s1057 = scalar_lea.vmem [#allocation2], 160
    %v1058 = vld [vmem:[%s1057] sm:$0xff]
    %v1059 = vld [vmem:[%s1057 + $0x8] sm:$0xff]
    %v1060 = vld [vmem:[%s1057 + $0x10] sm:$0xff]
    %v1061 = vld [vmem:[%s1057 + $0x18] sm:$0xff]
    %v1062 = vpack.c.bf16 %v1056, %v1056
    %1063 = vmatprep.subr.bf16.mxu0 %v448
    %1064 = vmatpush1.bf16.msra.mxu0 %v447
    %1065 = vmatprep.subr.bf16.mxu0 %v444
    %1066 = vmatpush1.bf16.msra.mxu0 %v443
    %1067 = vmatprep.subr.bf16.mxu0 %v440
    %1068 = vmatpush1.bf16.msra.mxu0 %v439
    %1069 = vmatprep.subr.bf16.mxu0 %v436
    %1070 = vmatpush1.bf16.msra.mxu0 %v435
    %1071 = vmatprep.subr.bf16.mxu0 %v432
    %1072 = vmatpush1.bf16.msra.mxu0 %v431
    %1073 = vmatprep.subr.bf16.mxu0 %v428
    %1074 = vmatpush1.bf16.msra.mxu0 %v427
    %1075 = vmatprep.subr.bf16.mxu0 %v424
    %1076 = vmatpush1.bf16.msra.mxu0 %v423
    %1077 = vmatprep.subr.bf16.mxu0 %v420
    %1078 = vmatpush1.bf16.msra.mxu0 %v419
    %1079 = vmatprep.subr.bf16.mxu0 0
    %1080 = vmatpush2.bf16.msra.mxu0 0
    %1081 = vmatprep.subr.bf16.mxu0 0
    %1082 = vmatpush2.bf16.msra.mxu0 0
    %1083 = vmatprep.subr.bf16.mxu0 0
    %1084 = vmatpush2.bf16.msra.mxu0 0
    %1085 = vmatprep.subr.bf16.mxu0 0
    %1086 = vmatpush2.bf16.msra.mxu0 0
    %1087 = vmatprep.subr.bf16.mxu0 0
    %1088 = vmatpush2.bf16.msra.mxu0 0
    %1089 = vmatprep.subr.bf16.mxu0 0
    %1090 = vmatpush2.bf16.msra.mxu0 0
    %1091 = vmatprep.subr.bf16.mxu0 0
    %1092 = vmatpush2.bf16.msra.mxu0 0
    %1093 = vmatprep.subr.bf16.mxu0 0
    %1094 = vmatpush2.bf16.msra.mxu0 0
    %1095 = vmatprep.mubr.bf16.mxu0 0
    %1096 = vmatmul.mubr.bf16.gmra.mxu0 %v1062
    %v1097 = vpop.f32.mrf.mxu0
    %v1098 = vadd.f32 0.0, %v1097
    %v1099 = vpop.f32.mrf.mxu0
    %v1100 = vadd.f32 0.0, %v1099
    %v1101 = vpop.f32.mrf.mxu0
    %v1102 = vpop.f32.mrf.mxu0
    %1103 = vdwg.mxu0
    %1104 = vmatprep.subr.bf16.mxu0 %v450
    %1105 = vmatpush1.bf16.msra.mxu0 %v449
    %1106 = vmatprep.subr.bf16.mxu0 %v446
    %1107 = vmatpush1.bf16.msra.mxu0 %v445
    %1108 = vmatprep.subr.bf16.mxu0 %v442
    %1109 = vmatpush1.bf16.msra.mxu0 %v441
    %1110 = vmatprep.subr.bf16.mxu0 %v438
    %1111 = vmatpush1.bf16.msra.mxu0 %v437
    %1112 = vmatprep.subr.bf16.mxu0 %v434
    %1113 = vmatpush1.bf16.msra.mxu0 %v433
    %1114 = vmatprep.subr.bf16.mxu0 %v430
    %1115 = vmatpush1.bf16.msra.mxu0 %v429
    %1116 = vmatprep.subr.bf16.mxu0 %v426
    %1117 = vmatpush1.bf16.msra.mxu0 %v425
    %1118 = vmatprep.subr.bf16.mxu0 %v422
    %1119 = vmatpush1.bf16.msra.mxu0 %v421
    %1120 = vmatprep.subr.bf16.mxu0 0
    %1121 = vmatpush2.bf16.msra.mxu0 0
    %1122 = vmatprep.subr.bf16.mxu0 0
    %1123 = vmatpush2.bf16.msra.mxu0 0
    %1124 = vmatprep.subr.bf16.mxu0 0
    %1125 = vmatpush2.bf16.msra.mxu0 0
    %1126 = vmatprep.subr.bf16.mxu0 0
    %1127 = vmatpush2.bf16.msra.mxu0 0
    %1128 = vmatprep.subr.bf16.mxu0 0
    %1129 = vmatpush2.bf16.msra.mxu0 0
    %1130 = vmatprep.subr.bf16.mxu0 0
    %1131 = vmatpush2.bf16.msra.mxu0 0
    %1132 = vmatprep.subr.bf16.mxu0 0
    %1133 = vmatpush2.bf16.msra.mxu0 0
    %1134 = vmatprep.subr.bf16.mxu0 0
    %1135 = vmatpush2.bf16.msra.mxu0 0
    %1136 = vmatprep.mubr.bf16.mxu0 0
    %1137 = vmatmul.mubr.bf16.gmra.mxu0 %v1062
    %v1138 = vpop.f32.mrf.mxu0
    %v1139 = vadd.f32 0.0, %v1138
    %v1140 = vpop.f32.mrf.mxu0
    %v1141 = vadd.f32 0.0, %v1140
    %v1142 = vpop.f32.mrf.mxu0
    %v1143 = vpop.f32.mrf.mxu0
    %1144 = vdwg.mxu0
    %v1145 = vadd.f32 %v1058, %v1098
    %v1146 = vadd.f32 %v1059, %v1100
    %v1147 = vadd.f32 %v1060, %v1139
    %v1148 = vadd.f32 %v1061, %v1141
    %v1149 = vxor.u32 %v1145, 2147483648
    %v1150 = vmul.f32 %v1149, 1.442695
    %v1151 = vpow.pop %v1150
    %v1152 = vadd.f32 %v1151, 1.0
    %v1153 = vrcp.pop %v1152
    %v1154 = vmul.f32 1.0, %v1153
    %v1155 = vxor.u32 %v1146, 2147483648
    %v1156 = vmul.f32 %v1155, 1.442695
    %v1157 = vpow.pop %v1156
    %v1158 = vadd.f32 %v1157, 1.0
    %v1159 = vrcp.pop %v1158
    %v1160 = vmul.f32 1.0, %v1159
    %v1161 = vtanh.pop %v1147
    %v1162 = vxor.u32 %v1148, 2147483648
    %v1163 = vmul.f32 %v1162, 1.442695
    %v1164 = vpow.pop %v1163
    %v1165 = vadd.f32 %v1164, 1.0
    %v1166 = vrcp.pop %v1165
    %v1167 = vmul.f32 1.0, %v1166
    %v1168 = vmul.f32 %v1160, %v1054
    %v1169 = vmul.f32 %v1154, %v1161
    %v1170 = vadd.f32 %v1168, %v1169
    %v1171 = vtanh.pop %v1170
    %v1172 = vmul.f32 %v1167, %v1171
    %s1173 = scalar_lea.vmem [#allocation2], 192
    %v1174 = vld [vmem:[%s1173] sm:$0xff]
    %v1175 = vld [vmem:[%s1173 + $0x8] sm:$0xff]
    %v1176 = vld [vmem:[%s1173 + $0x10] sm:$0xff]
    %v1177 = vld [vmem:[%s1173 + $0x18] sm:$0xff]
    %v1178 = vpack.c.bf16 %v1172, %v1172
    %1179 = vmatprep.subr.bf16.mxu0 %v448
    %1180 = vmatpush1.bf16.msra.mxu0 %v447
    %1181 = vmatprep.subr.bf16.mxu0 %v444
    %1182 = vmatpush1.bf16.msra.mxu0 %v443
    %1183 = vmatprep.subr.bf16.mxu0 %v440
    %1184 = vmatpush1.bf16.msra.mxu0 %v439
    %1185 = vmatprep.subr.bf16.mxu0 %v436
    %1186 = vmatpush1.bf16.msra.mxu0 %v435
    %1187 = vmatprep.subr.bf16.mxu0 %v432
    %1188 = vmatpush1.bf16.msra.mxu0 %v431
    %1189 = vmatprep.subr.bf16.mxu0 %v428
    %1190 = vmatpush1.bf16.msra.mxu0 %v427
    %1191 = vmatprep.subr.bf16.mxu0 %v424
    %1192 = vmatpush1.bf16.msra.mxu0 %v423
    %1193 = vmatprep.subr.bf16.mxu0 %v420
    %1194 = vmatpush1.bf16.msra.mxu0 %v419
    %1195 = vmatprep.subr.bf16.mxu0 0
    %1196 = vmatpush2.bf16.msra.mxu0 0
    %1197 = vmatprep.subr.bf16.mxu0 0
    %1198 = vmatpush2.bf16.msra.mxu0 0
    %1199 = vmatprep.subr.bf16.mxu0 0
    %1200 = vmatpush2.bf16.msra.mxu0 0
    %1201 = vmatprep.subr.bf16.mxu0 0
    %1202 = vmatpush2.bf16.msra.mxu0 0
    %1203 = vmatprep.subr.bf16.mxu0 0
    %1204 = vmatpush2.bf16.msra.mxu0 0
    %1205 = vmatprep.subr.bf16.mxu0 0
    %1206 = vmatpush2.bf16.msra.mxu0 0
    %1207 = vmatprep.subr.bf16.mxu0 0
    %1208 = vmatpush2.bf16.msra.mxu0 0
    %1209 = vmatprep.subr.bf16.mxu0 0
    %1210 = vmatpush2.bf16.msra.mxu0 0
    %1211 = vmatprep.mubr.bf16.mxu0 0
    %1212 = vmatmul.mubr.bf16.gmra.mxu0 %v1178
    %v1213 = vpop.f32.mrf.mxu0
    %v1214 = vadd.f32 0.0, %v1213
    %v1215 = vpop.f32.mrf.mxu0
    %v1216 = vadd.f32 0.0, %v1215
    %v1217 = vpop.f32.mrf.mxu0
    %v1218 = vpop.f32.mrf.mxu0
    %1219 = vdwg.mxu0
    %1220 = vmatprep.subr.bf16.mxu0 %v450
    %1221 = vmatpush1.bf16.msra.mxu0 %v449
    %1222 = vmatprep.subr.bf16.mxu0 %v446
    %1223 = vmatpush1.bf16.msra.mxu0 %v445
    %1224 = vmatprep.subr.bf16.mxu0 %v442
    %1225 = vmatpush1.bf16.msra.mxu0 %v441
    %1226 = vmatprep.subr.bf16.mxu0 %v438
    %1227 = vmatpush1.bf16.msra.mxu0 %v437
    %1228 = vmatprep.subr.bf16.mxu0 %v434
    %1229 = vmatpush1.bf16.msra.mxu0 %v433
    %1230 = vmatprep.subr.bf16.mxu0 %v430
    %1231 = vmatpush1.bf16.msra.mxu0 %v429
    %1232 = vmatprep.subr.bf16.mxu0 %v426
    %1233 = vmatpush1.bf16.msra.mxu0 %v425
    %1234 = vmatprep.subr.bf16.mxu0 %v422
    %1235 = vmatpush1.bf16.msra.mxu0 %v421
    %1236 = vmatprep.subr.bf16.mxu0 0
    %1237 = vmatpush2.bf16.msra.mxu0 0
    %1238 = vmatprep.subr.bf16.mxu0 0
    %1239 = vmatpush2.bf16.msra.mxu0 0
    %1240 = vmatprep.subr.bf16.mxu0 0
    %1241 = vmatpush2.bf16.msra.mxu0 0
    %1242 = vmatprep.subr.bf16.mxu0 0
    %1243 = vmatpush2.bf16.msra.mxu0 0
    %1244 = vmatprep.subr.bf16.mxu0 0
    %1245 = vmatpush2.bf16.msra.mxu0 0
    %1246 = vmatprep.subr.bf16.mxu0 0
    %1247 = vmatpush2.bf16.msra.mxu0 0
    %1248 = vmatprep.subr.bf16.mxu0 0
    %1249 = vmatpush2.bf16.msra.mxu0 0
    %1250 = vmatprep.subr.bf16.mxu0 0
    %1251 = vmatpush2.bf16.msra.mxu0 0
    %1252 = vmatprep.mubr.bf16.mxu0 0
    %1253 = vmatmul.mubr.bf16.gmra.mxu0 %v1178
    %v1254 = vpop.f32.mrf.mxu0
    %v1255 = vadd.f32 0.0, %v1254
    %v1256 = vpop.f32.mrf.mxu0
    %v1257 = vadd.f32 0.0, %v1256
    %v1258 = vpop.f32.mrf.mxu0
    %v1259 = vpop.f32.mrf.mxu0
    %1260 = vdwg.mxu0
    %v1261 = vadd.f32 %v1174, %v1214
    %v1262 = vadd.f32 %v1175, %v1216
    %v1263 = vadd.f32 %v1176, %v1255
    %v1264 = vadd.f32 %v1177, %v1257
    %v1265 = vxor.u32 %v1261, 2147483648
    %v1266 = vmul.f32 %v1265, 1.442695
    %v1267 = vpow.pop %v1266
    %v1268 = vadd.f32 %v1267, 1.0
    %v1269 = vrcp.pop %v1268
    %v1270 = vmul.f32 1.0, %v1269
    %v1271 = vxor.u32 %v1262, 2147483648
    %v1272 = vmul.f32 %v1271, 1.442695
    %v1273 = vpow.pop %v1272
    %v1274 = vadd.f32 %v1273, 1.0
    %v1275 = vrcp.pop %v1274
    %v1276 = vmul.f32 1.0, %v1275
    %v1277 = vtanh.pop %v1263
    %v1278 = vxor.u32 %v1264, 2147483648
    %v1279 = vmul.f32 %v1278, 1.442695
    %v1280 = vpow.pop %v1279
    %v1281 = vadd.f32 %v1280, 1.0
    %v1282 = vrcp.pop %v1281
    %v1283 = vmul.f32 1.0, %v1282
    %v1284 = vmul.f32 %v1276, %v1170
    %v1285 = vmul.f32 %v1270, %v1277
    %v1286 = vadd.f32 %v1284, %v1285
    %v1287 = vtanh.pop %v1286
    %v1288 = vmul.f32 %v1283, %v1287
    %s1289 = scalar_lea.vmem [#allocation2], 224
    %v1290 = vld [vmem:[%s1289] sm:$0xff]
    %v1291 = vld [vmem:[%s1289 + $0x8] sm:$0xff]
    %v1292 = vld [vmem:[%s1289 + $0x10] sm:$0xff]
    %v1293 = vld [vmem:[%s1289 + $0x18] sm:$0xff]
    %v1294 = vpack.c.bf16 %v1288, %v1288
    %1295 = vmatprep.subr.bf16.mxu0 %v448
    %1296 = vmatpush1.bf16.msra.mxu0 %v447
    %1297 = vmatprep.subr.bf16.mxu0 %v444
    %1298 = vmatpush1.bf16.msra.mxu0 %v443
    %1299 = vmatprep.subr.bf16.mxu0 %v440
    %1300 = vmatpush1.bf16.msra.mxu0 %v439
    %1301 = vmatprep.subr.bf16.mxu0 %v436
    %1302 = vmatpush1.bf16.msra.mxu0 %v435
    %1303 = vmatprep.subr.bf16.mxu0 %v432
    %1304 = vmatpush1.bf16.msra.mxu0 %v431
    %1305 = vmatprep.subr.bf16.mxu0 %v428
    %1306 = vmatpush1.bf16.msra.mxu0 %v427
    %1307 = vmatprep.subr.bf16.mxu0 %v424
    %1308 = vmatpush1.bf16.msra.mxu0 %v423
    %1309 = vmatprep.subr.bf16.mxu0 %v420
    %1310 = vmatpush1.bf16.msra.mxu0 %v419
    %1311 = vmatprep.subr.bf16.mxu0 0
    %1312 = vmatpush2.bf16.msra.mxu0 0
    %1313 = vmatprep.subr.bf16.mxu0 0
    %1314 = vmatpush2.bf16.msra.mxu0 0
    %1315 = vmatprep.subr.bf16.mxu0 0
    %1316 = vmatpush2.bf16.msra.mxu0 0
    %1317 = vmatprep.subr.bf16.mxu0 0
    %1318 = vmatpush2.bf16.msra.mxu0 0
    %1319 = vmatprep.subr.bf16.mxu0 0
    %1320 = vmatpush2.bf16.msra.mxu0 0
    %1321 = vmatprep.subr.bf16.mxu0 0
    %1322 = vmatpush2.bf16.msra.mxu0 0
    %1323 = vmatprep.subr.bf16.mxu0 0
    %1324 = vmatpush2.bf16.msra.mxu0 0
    %1325 = vmatprep.subr.bf16.mxu0 0
    %1326 = vmatpush2.bf16.msra.mxu0 0
    %1327 = vmatprep.mubr.bf16.mxu0 0
    %1328 = vmatmul.mubr.bf16.gmra.mxu0 %v1294
    %v1329 = vpop.f32.mrf.mxu0
    %v1330 = vadd.f32 0.0, %v1329
    %v1331 = vpop.f32.mrf.mxu0
    %v1332 = vadd.f32 0.0, %v1331
    %v1333 = vpop.f32.mrf.mxu0
    %v1334 = vpop.f32.mrf.mxu0
    %1335 = vdwg.mxu0
    %1336 = vmatprep.subr.bf16.mxu0 %v450
    %1337 = vmatpush1.bf16.msra.mxu0 %v449
    %1338 = vmatprep.subr.bf16.mxu0 %v446
    %1339 = vmatpush1.bf16.msra.mxu0 %v445
    %1340 = vmatprep.subr.bf16.mxu0 %v442
    %1341 = vmatpush1.bf16.msra.mxu0 %v441
    %1342 = vmatprep.subr.bf16.mxu0 %v438
    %1343 = vmatpush1.bf16.msra.mxu0 %v437
    %1344 = vmatprep.subr.bf16.mxu0 %v434
    %1345 = vmatpush1.bf16.msra.mxu0 %v433
    %1346 = vmatprep.subr.bf16.mxu0 %v430
    %1347 = vmatpush1.bf16.msra.mxu0 %v429
    %1348 = vmatprep.subr.bf16.mxu0 %v426
    %1349 = vmatpush1.bf16.msra.mxu0 %v425
    %1350 = vmatprep.subr.bf16.mxu0 %v422
    %1351 = vmatpush1.bf16.msra.mxu0 %v421
    %1352 = vmatprep.subr.bf16.mxu0 0
    %1353 = vmatpush2.bf16.msra.mxu0 0
    %1354 = vmatprep.subr.bf16.mxu0 0
    %1355 = vmatpush2.bf16.msra.mxu0 0
    %1356 = vmatprep.subr.bf16.mxu0 0
    %1357 = vmatpush2.bf16.msra.mxu0 0
    %1358 = vmatprep.subr.bf16.mxu0 0
    %1359 = vmatpush2.bf16.msra.mxu0 0
    %1360 = vmatprep.subr.bf16.mxu0 0
    %1361 = vmatpush2.bf16.msra.mxu0 0
    %1362 = vmatprep.subr.bf16.mxu0 0
    %1363 = vmatpush2.bf16.msra.mxu0 0
    %1364 = vmatprep.subr.bf16.mxu0 0
    %1365 = vmatpush2.bf16.msra.mxu0 0
    %1366 = vmatprep.subr.bf16.mxu0 0
    %1367 = vmatpush2.bf16.msra.mxu0 0
    %1368 = vmatprep.mubr.bf16.mxu0 0
    %1369 = vmatmul.mubr.bf16.gmra.mxu0 %v1294
    %v1370 = vpop.f32.mrf.mxu0
    %v1371 = vadd.f32 0.0, %v1370
    %v1372 = vpop.f32.mrf.mxu0
    %v1373 = vadd.f32 0.0, %v1372
    %v1374 = vpop.f32.mrf.mxu0
    %v1375 = vpop.f32.mrf.mxu0
    %1376 = vdwg.mxu0
    %v1377 = vadd.f32 %v1290, %v1330
    %v1378 = vadd.f32 %v1291, %v1332
    %v1379 = vadd.f32 %v1292, %v1371
    %v1380 = vadd.f32 %v1293, %v1373
    %v1381 = vxor.u32 %v1377, 2147483648
    %v1382 = vmul.f32 %v1381, 1.442695
    %v1383 = vpow.pop %v1382
    %v1384 = vadd.f32 %v1383, 1.0
    %v1385 = vrcp.pop %v1384
    %v1386 = vmul.f32 1.0, %v1385
    %v1387 = vxor.u32 %v1378, 2147483648
    %v1388 = vmul.f32 %v1387, 1.442695
    %v1389 = vpow.pop %v1388
    %v1390 = vadd.f32 %v1389, 1.0
    %v1391 = vrcp.pop %v1390
    %v1392 = vmul.f32 1.0, %v1391
    %v1393 = vtanh.pop %v1379
    %v1394 = vxor.u32 %v1380, 2147483648
    %v1395 = vmul.f32 %v1394, 1.442695
    %v1396 = vpow.pop %v1395
    %v1397 = vadd.f32 %v1396, 1.0
    %v1398 = vrcp.pop %v1397
    %v1399 = vmul.f32 1.0, %v1398
    %v1400 = vmul.f32 %v1392, %v1286
    %v1401 = vmul.f32 %v1386, %v1393
    %v1402 = vadd.f32 %v1400, %v1401
    %v1403 = vtanh.pop %v1402
    %v1404 = vmul.f32 %v1399, %v1403
    %v1405 = vpack.c.bf16 %v1404, %v1404
    %v1406 = vld [vmem:[%s4] sm:$0xf]
    %v1407 = vld [vmem:[%s4 + $0x4] sm:$0xf]
    %v1408 = vld [vmem:[%s4 + $0x8] sm:$0xf]
    %v1409 = vld [vmem:[%s4 + $0xc] sm:$0xf]
    %v1410 = vld [vmem:[%s4 + $0x10] sm:$0xf]
    %v1411 = vld [vmem:[%s4 + $0x14] sm:$0xf]
    %v1412 = vld [vmem:[%s4 + $0x18] sm:$0xf]
    %v1413 = vld [vmem:[%s4 + $0x1c] sm:$0xf]
    %v1414 = vld [vmem:[%s4 + $0x20] sm:$0xf]
    %v1415 = vld [vmem:[%s4 + $0x24] sm:$0xf]
    %v1416 = vld [vmem:[%s4 + $0x28] sm:$0xf]
    %v1417 = vld [vmem:[%s4 + $0x2c] sm:$0xf]
    %v1418 = vld [vmem:[%s4 + $0x30] sm:$0xf]
    %v1419 = vld [vmem:[%s4 + $0x34] sm:$0xf]
    %v1420 = vld [vmem:[%s4 + $0x38] sm:$0xf]
    %v1421 = vld [vmem:[%s4 + $0x3c] sm:$0xf]
    %v1422 = vld [vmem:[%s5] sm:$0x1]
    %v1424 = vlaneseq
    %v1425 = vshrl.u32 %v1424, 7
    %v1426 = vsub.s32 0, %v1425
    %v1427 = vrot.slane %v1422, %v1426
    %v1445 = vunpack.c.l.b16 %v1406
    %v1446 = vunpack.c.l.b16 %v1407
    %v1447 = vunpack.c.l.b16 %v1408
    %v1448 = vunpack.c.l.b16 %v1409
    %v1449 = vunpack.c.l.b16 %v1410
    %v1450 = vunpack.c.l.b16 %v1411
    %v1451 = vunpack.c.l.b16 %v1412
    %v1452 = vunpack.c.l.b16 %v1413
    %v1453 = vunpack.c.l.b16 %v1414
    %v1454 = vunpack.c.l.b16 %v1415
    %v1455 = vunpack.c.l.b16 %v1416
    %v1456 = vunpack.c.l.b16 %v1417
    %v1457 = vunpack.c.l.b16 %v1418
    %v1458 = vunpack.c.l.b16 %v1419
    %v1459 = vunpack.c.l.b16 %v1420
    %v1460 = vunpack.c.l.b16 %v1421
    %v1461 = vpack.c.b16 %v1446, %v1445
    %v1462 = vpack.c.b16 %v1448, %v1447
    %v1463 = vpack.c.b16 %v1450, %v1449
    %v1464 = vpack.c.b16 %v1452, %v1451
    %v1465 = vpack.c.b16 %v1454, %v1453
    %v1466 = vpack.c.b16 %v1456, %v1455
    %v1467 = vpack.c.b16 %v1458, %v1457
    %v1468 = vpack.c.b16 %v1460, %v1459
    %1477 = vmatprep.subr.bf16.mxu0 0
    %1478 = vmatpush1.bf16.msra.mxu0 %v1468
    %1479 = vmatprep.subr.bf16.mxu0 0
    %1480 = vmatpush1.bf16.msra.mxu0 %v1467
    %1481 = vmatprep.subr.bf16.mxu0 0
    %1482 = vmatpush1.bf16.msra.mxu0 %v1466
    %1483 = vmatprep.subr.bf16.mxu0 0
    %1484 = vmatpush1.bf16.msra.mxu0 %v1465
    %1485 = vmatprep.subr.bf16.mxu0 0
    %1486 = vmatpush1.bf16.msra.mxu0 %v1464
    %1487 = vmatprep.subr.bf16.mxu0 0
    %1488 = vmatpush1.bf16.msra.mxu0 %v1463
    %1489 = vmatprep.subr.bf16.mxu0 0
    %1490 = vmatpush1.bf16.msra.mxu0 %v1462
    %1491 = vmatprep.subr.bf16.mxu0 0
    %1492 = vmatpush1.bf16.msra.mxu0 %v1461
    %1493 = vmatprep.subr.bf16.mxu0 0
    %1494 = vmatpush2.bf16.msra.mxu0 0
    %1495 = vmatprep.subr.bf16.mxu0 0
    %1496 = vmatpush2.bf16.msra.mxu0 0
    %1497 = vmatprep.subr.bf16.mxu0 0
    %1498 = vmatpush2.bf16.msra.mxu0 0
    %1499 = vmatprep.subr.bf16.mxu0 0
    %1500 = vmatpush2.bf16.msra.mxu0 0
    %1501 = vmatprep.subr.bf16.mxu0 0
    %1502 = vmatpush2.bf16.msra.mxu0 0
    %1503 = vmatprep.subr.bf16.mxu0 0
    %1504 = vmatpush2.bf16.msra.mxu0 0
    %1505 = vmatprep.subr.bf16.mxu0 0
    %1506 = vmatpush2.bf16.msra.mxu0 0
    %1507 = vmatprep.subr.bf16.mxu0 0
    %1508 = vmatpush2.bf16.msra.mxu0 0
    %1509 = vmatprep.mubr.bf16.mxu0 0
    %1510 = vmatmul.mubr.bf16.gmra.mxu0 %v1405
    %v1511 = vpop.f32.mrf.mxu0
    %v1512 = vadd.f32 %v1427, %v1511
    %v1513 = vpop.f32.mrf.mxu0
    %v1514 = vpop.f32.mrf.mxu0
    %v1515 = vpop.f32.mrf.mxu0
    %1516 = vdwg.mxu0
    %v1517 = vlaneseq
    %v1518 = vand.u32 %v1517, 127
    %vm1519 = vcmp.lt.s32.totalorder %v1518, 8
    %v1520 = vsel %vm1519, %v1512, -1e+30
    %1521 = vmax.xlane.f32.xlu0 %v1520
    %v1522 = vpop.xlane.xlu0 %1521
    %v1523 = vsub.f32 %v1520, %v1522
    %v1524 = vmul.f32 %v1523, 1.442695
    %v1525 = vpow.pop %v1524
    %1526 = vadd.xlane.f32.xlu0 %v1525
    %v1527 = vpop.xlane.xlu0 %1526
    %v1528 = vrcp.pop %v1527
    %v1529 = vmul.f32 %v1525, %v1528
    %1530 = vst [vmem:[%s6] sm:$0xff] %v1529
    // Predicated region
    $region30: #{forward.1} parent=1 // pred_check
      _
    $region31: #{forward.1} parent=1 // pred_check_branch
      %1532 = sbr.rel (0) target = $region33
    $region32: #{forward.1} parent=1 // pred_region
      _
    $region33: #{forward.1} parent=1 // pred_fallthru
      _
    // Predicated region
    $region34: #{forward.1} parent=1 // pred_check
      _
    $region35: #{forward.1} parent=1 // pred_check_branch
      %1534 = sbr.rel (0) target = $region37
    $region36: #{forward.1} parent=1 // pred_region
      _
    $region37: #{forward.1} parent=1 // pred_fallthru
      _
    %1535 = vsyncpa [#allocation4], 1

</llo_original>
